<compile_context>
chip_gen: v5e
topology: v5e:2x2
jax: 0.10.0
libtpu: 0.0.40
codegen_flags: <defaults>
</compile_context>

<pallas_src>
import functools
import math

import jax
import jax.numpy as jnp
from jax.experimental import pallas as pl
from jax.experimental.pallas import tpu as pltpu


def _attn_kernel(x_ref, wq_ref, bq_ref, wk_ref, bk_ref, wv_ref, bv_ref,
                 wp_ref, bp_ref, y_ref, att_ref, *, n_head, scale):
    """One block of `block_b` batch elements per grid step.

    x_ref:   (Bt, T, C)   input slab
    w*_ref:  (C, C)       projection weights (resident across the grid)
    b*_ref:  (1, C)       projection biases
    y_ref:   (Bt, T, C)   output tokens
    att_ref: (Bt, T, T)   head-averaged attention matrix
    """
    Bt, T, C = x_ref.shape
    hd = C // n_head

    # Fused lane-dense projections: (Bt*T, C) @ (C, C) on the MXU, f32 accumulate.
    x2 = x_ref[...].reshape(Bt * T, C).astype(jnp.float32)
    q = jnp.dot(x2, wq_ref[...], preferred_element_type=jnp.float32) + bq_ref[...]
    k = jnp.dot(x2, wk_ref[...], preferred_element_type=jnp.float32) + bk_ref[...]
    v = jnp.dot(x2, wv_ref[...], preferred_element_type=jnp.float32) + bv_ref[...]

    att_sum = jnp.zeros((Bt, T, T), jnp.float32)
    y_heads = []
    # n_head is small and static -> unrolled at trace time.
    for h in range(n_head):
        sl = slice(h * hd, (h + 1) * hd)
        qh = q[:, sl].reshape(Bt, T, hd)
        kh = k[:, sl].reshape(Bt, T, hd)
        vh = v[:, sl].reshape(Bt, T, hd)

        s = jnp.einsum('btd,bsd->bts', qh, kh,
                       preferred_element_type=jnp.float32) * scale
        s = s - jnp.max(s, axis=-1, keepdims=True)          # stable softmax
        p = jnp.exp(s)
        p = p / jnp.sum(p, axis=-1, keepdims=True)

        att_sum = att_sum + p
        y_heads.append(jnp.einsum('bts,bsd->btd', p, vh,
                                  preferred_element_type=jnp.float32))

    # Merge heads and apply output projection.
    y = jnp.concatenate(y_heads, axis=-1).reshape(Bt * T, C)     # (Bt*T, C)
    y = jnp.dot(y, wp_ref[...], preferred_element_type=jnp.float32) + bp_ref[...]

    y_ref[...] = y.reshape(Bt, T, C).astype(y_ref.dtype)
    att_ref[...] = (att_sum * (1.0 / n_head)).astype(att_ref.dtype)


def full_attention(x, wq, bq, wk, bk, wv, bv, wp, bp, n_head, *, block_b=None):
    """Pallas implementation of FullAttention.forward (inference mode).

    x: (B, T, C).  Weights are (C, C) (applied as x @ W + b), biases are (C,).
    Returns (y, att): y is (B, T, C), att is (B, T, T) (mean over heads).
    """
    B, T, C = x.shape
    assert C % n_head == 0
    hd = C // n_head
    scale = 1.0 / math.sqrt(hd)

    if block_b is None:
        # Keep >=2 grid steps when possible so v7x's two TensorCores both get
        # work, while keeping each step as large as possible.
        block_b = B // 2 if (B > 1 and B % 2 == 0) else B
    assert B % block_b == 0
    grid = (B // block_b,)

    bq2 = bq.reshape(1, C)
    bk2 = bk.reshape(1, C)
    bv2 = bv.reshape(1, C)
    bp2 = bp.reshape(1, C)

    flops = B * (8 * T * C * C + 4 * T * T * C)          # QKV + attn + AV + proj
    transcendentals = B * n_head * T * T                 # exp in softmax
    bytes_accessed = 4 * (2 * B * T * C + B * T * T + 4 * C * C + 4 * C)
    cost = pl.CostEstimate(flops=flops,
                           transcendentals=transcendentals,
                           bytes_accessed=bytes_accessed)

    kernel = functools.partial(_attn_kernel, n_head=n_head, scale=scale)

    weight_spec = pl.BlockSpec((C, C), lambda b: (0, 0))
    bias_spec = pl.BlockSpec((1, C), lambda b: (0, 0))

    y, att = pl.pallas_call(
        kernel,
        out_shape=(
            jax.ShapeDtypeStruct((B, T, C), x.dtype),
            jax.ShapeDtypeStruct((B, T, T), x.dtype),
        ),
        grid=grid,
        in_specs=[
            pl.BlockSpec((block_b, T, C), lambda b: (b, 0, 0)),   # x
            weight_spec, bias_spec,                               # Wq, bq
            weight_spec, bias_spec,                               # Wk, bk
            weight_spec, bias_spec,                               # Wv, bv
            weight_spec, bias_spec,                               # Wp, bp
        ],
        out_specs=(
            pl.BlockSpec((block_b, T, C), lambda b: (b, 0, 0)),   # y
            pl.BlockSpec((block_b, T, T), lambda b: (b, 0, 0)),   # att (head mean)
        ),
        compiler_params=pltpu.CompilerParams(
            dimension_semantics=("parallel",)),
        cost_estimate=cost,
    )(x, wq, bq2, wk, bk2, wv, bv2, wp, bp2)
    return y, att


def _reference(x, wq, bq, wk, bk, wv, bv, wp, bp, n_head):
    """Pure-JAX mirror of the PyTorch forward (eval mode), for verification."""
    B, T, C = x.shape
    hd = C // n_head
    xf = x.astype(jnp.float32)
    q = xf @ wq + bq
    k = xf @ wk + bk
    v = xf @ wv + bv
    q = q.reshape(B, T, n_head, hd).transpose(0, 2, 1, 3)
    k = k.reshape(B, T, n_head, hd).transpose(0, 2, 1, 3)
    v = v.reshape(B, T, n_head, hd).transpose(0, 2, 1, 3)
    att = (q @ jnp.swapaxes(k, -1, -2)) * (1.0 / math.sqrt(hd))
    att = jax.nn.softmax(att, axis=-1)
    y = att @ v                                   # (B, H, T, hd)
    y = y.transpose(0, 2, 1, 3).reshape(B, T, C)
    y = y @ wp + bp
    att_mean = att.mean(axis=1)                   # (B, T, T)
    return y.astype(x.dtype), att_mean.astype(x.dtype)


if __name__ == "__main__":
    key = jax.random.PRNGKey(0)
    B, T, C = 2, 16, 64          # (batch, seq_len, n_embd)
    n_head = 4

    ks = jax.random.split(key, 9)
    x = jax.random.normal(ks[0], (B, T, C), dtype=jnp.float32)
    wq = 0.05 * jax.random.normal(ks[1], (C, C), dtype=jnp.float32)
    wk = 0.05 * jax.random.normal(ks[2], (C, C), dtype=jnp.float32)
    wv = 0.05 * jax.random.normal(ks[3], (C, C), dtype=jnp.float32)
    wp = 0.05 * jax.random.normal(ks[4], (C, C), dtype=jnp.float32)
    bq = 0.05 * jax.random.normal(ks[5], (C,), dtype=jnp.float32)
    bk = 0.05 * jax.random.normal(ks[6], (C,), dtype=jnp.float32)
    bv = 0.05 * jax.random.normal(ks[7], (C,), dtype=jnp.float32)
    bp = 0.05 * jax.random.normal(ks[8], (C,), dtype=jnp.float32)

    y, att = full_attention(x, wq, bq, wk, bk, wv, bv, wp, bp, n_head)
    y, att = jax.block_until_ready((y, att))

    y_ref, att_ref = _reference(x, wq, bq, wk, bk, wv, bv, wp, bp, n_head)
    assert jnp.allclose(y, y_ref, atol=1e-4, rtol=1e-4), \
        f"y mismatch, max err {jnp.max(jnp.abs(y - y_ref))}"
    assert jnp.allclose(att, att_ref, atol=1e-5, rtol=1e-4), \
        f"att mismatch, max err {jnp.max(jnp.abs(att - att_ref))}"

    print("KERNEL_OK")
</pallas_src>

<mosaic_0001>
module attributes {stable_mosaic.version = 11 : i64} {
  func.func @_attn_kernel(%arg0: i32, %arg1: memref<1x16x64xf32, #tpu.memory_space<vmem>>, %arg2: memref<64x64xf32, #tpu.memory_space<vmem>>, %arg3: memref<1x64xf32, #tpu.memory_space<vmem>>, %arg4: memref<64x64xf32, #tpu.memory_space<vmem>>, %arg5: memref<1x64xf32, #tpu.memory_space<vmem>>, %arg6: memref<64x64xf32, #tpu.memory_space<vmem>>, %arg7: memref<1x64xf32, #tpu.memory_space<vmem>>, %arg8: memref<64x64xf32, #tpu.memory_space<vmem>>, %arg9: memref<1x64xf32, #tpu.memory_space<vmem>>, %arg10: memref<1x16x64xf32, #tpu.memory_space<vmem>>, %arg11: memref<1x16x16xf32, #tpu.memory_space<vmem>>) attributes {dimension_semantics = [#tpu.dimension_semantics<parallel>], iteration_bounds = array<i64: 2>, scalar_prefetch = 0 : i64, scratch_operands = 0 : i64, tpu.core_type = #tpu.core_type<tc>, window_params = [{transform_indices = @transform_0, window_bounds = array<i64: 1, 16, 64>}, {pipeline_mode = #tpu.pipeline_mode<synchronous>, transform_indices = @transform_1, window_bounds = array<i64: 64, 64>}, {pipeline_mode = #tpu.pipeline_mode<synchronous>, transform_indices = @transform_2, window_bounds = array<i64: 1, 64>}, {pipeline_mode = #tpu.pipeline_mode<synchronous>, transform_indices = @transform_3, window_bounds = array<i64: 64, 64>}, {pipeline_mode = #tpu.pipeline_mode<synchronous>, transform_indices = @transform_4, window_bounds = array<i64: 1, 64>}, {pipeline_mode = #tpu.pipeline_mode<synchronous>, transform_indices = @transform_5, window_bounds = array<i64: 64, 64>}, {pipeline_mode = #tpu.pipeline_mode<synchronous>, transform_indices = @transform_6, window_bounds = array<i64: 1, 64>}, {pipeline_mode = #tpu.pipeline_mode<synchronous>, transform_indices = @transform_7, window_bounds = array<i64: 64, 64>}, {pipeline_mode = #tpu.pipeline_mode<synchronous>, transform_indices = @transform_8, window_bounds = array<i64: 1, 64>}, {transform_indices = @transform_9, window_bounds = array<i64: 1, 16, 64>}, {transform_indices = @transform_10, window_bounds = array<i64: 1, 16, 16>}]} {
    %c0 = arith.constant 0 : index
    %c0_0 = arith.constant 0 : index
    %c0_1 = arith.constant 0 : index
    %0 = vector.load %arg1[%c0, %c0_0, %c0_1] : memref<1x16x64xf32, #tpu.memory_space<vmem>>, vector<1x16x64xf32>
    %1 = vector.shape_cast %0 : vector<1x16x64xf32> to vector<16x64xf32>
    %c0_2 = arith.constant 0 : index
    %c0_3 = arith.constant 0 : index
    %2 = vector.load %arg2[%c0_2, %c0_3] : memref<64x64xf32, #tpu.memory_space<vmem>>, vector<64x64xf32>
    %cst = arith.constant dense<0.000000e+00> : vector<16x64xf32>
    %3 = tpu.matmul %1, %2, %cst {dimension_numbers = #tpu.dot_dimension_numbers<[1], [0], [0], [1], [0, 0, 1, 1], [], []>} : vector<16x64xf32>, vector<64x64xf32>, vector<16x64xf32> -> vector<16x64xf32>
    %c0_4 = arith.constant 0 : index
    %c0_5 = arith.constant 0 : index
    %4 = vector.load %arg3[%c0_4, %c0_5] : memref<1x64xf32, #tpu.memory_space<vmem>>, vector<1x64xf32>
    %5 = vector.broadcast %4 : vector<1x64xf32> to vector<16x64xf32>
    %6 = arith.addf %3, %5 : vector<16x64xf32>
    %c0_6 = arith.constant 0 : index
    %c0_7 = arith.constant 0 : index
    %7 = vector.load %arg4[%c0_6, %c0_7] : memref<64x64xf32, #tpu.memory_space<vmem>>, vector<64x64xf32>
    %cst_8 = arith.constant dense<0.000000e+00> : vector<16x64xf32>
    %8 = tpu.matmul %1, %7, %cst_8 {dimension_numbers = #tpu.dot_dimension_numbers<[1], [0], [0], [1], [0, 0, 1, 1], [], []>} : vector<16x64xf32>, vector<64x64xf32>, vector<16x64xf32> -> vector<16x64xf32>
    %c0_9 = arith.constant 0 : index
    %c0_10 = arith.constant 0 : index
    %9 = vector.load %arg5[%c0_9, %c0_10] : memref<1x64xf32, #tpu.memory_space<vmem>>, vector<1x64xf32>
    %10 = vector.broadcast %9 : vector<1x64xf32> to vector<16x64xf32>
    %11 = arith.addf %8, %10 : vector<16x64xf32>
    %c0_11 = arith.constant 0 : index
    %c0_12 = arith.constant 0 : index
    %12 = vector.load %arg6[%c0_11, %c0_12] : memref<64x64xf32, #tpu.memory_space<vmem>>, vector<64x64xf32>
    %cst_13 = arith.constant dense<0.000000e+00> : vector<16x64xf32>
    %13 = tpu.matmul %1, %12, %cst_13 {dimension_numbers = #tpu.dot_dimension_numbers<[1], [0], [0], [1], [0, 0, 1, 1], [], []>} : vector<16x64xf32>, vector<64x64xf32>, vector<16x64xf32> -> vector<16x64xf32>
    %c0_14 = arith.constant 0 : index
    %c0_15 = arith.constant 0 : index
    %14 = vector.load %arg7[%c0_14, %c0_15] : memref<1x64xf32, #tpu.memory_space<vmem>>, vector<1x64xf32>
    %15 = vector.broadcast %14 : vector<1x64xf32> to vector<16x64xf32>
    %16 = arith.addf %13, %15 : vector<16x64xf32>
    %cst_16 = arith.constant 0.000000e+00 : f32
    %17 = vector.broadcast %cst_16 : f32 to vector<1x16x16xf32>
    %18 = vector.extract_strided_slice %6 {offsets = [0, 0], sizes = [16, 16], strides = [1, 1]} : vector<16x64xf32> to vector<16x16xf32>
    %19 = vector.shape_cast %18 : vector<16x16xf32> to vector<1x16x16xf32>
    %20 = vector.extract_strided_slice %11 {offsets = [0, 0], sizes = [16, 16], strides = [1, 1]} : vector<16x64xf32> to vector<16x16xf32>
    %21 = vector.shape_cast %20 : vector<16x16xf32> to vector<1x16x16xf32>
    %22 = vector.extract_strided_slice %16 {offsets = [0, 0], sizes = [16, 16], strides = [1, 1]} : vector<16x64xf32> to vector<16x16xf32>
    %23 = vector.shape_cast %22 : vector<16x16xf32> to vector<1x16x16xf32>
    "tpu.trace_start"() <{level = 10 : i32, message = "btd,bsd->bts"}> : () -> ()
    %cst_17 = arith.constant dense<0.000000e+00> : vector<1x16x16xf32>
    %24 = tpu.matmul %19, %21, %cst_17 {dimension_numbers = #tpu.dot_dimension_numbers<[2], [2], [1], [1], [0, 0, 0, 1, 1, 1], [0], [0]>} : vector<1x16x16xf32>, vector<1x16x16xf32>, vector<1x16x16xf32> -> vector<1x16x16xf32>
    "tpu.trace_stop"() : () -> ()
    %cst_18 = arith.constant 2.500000e-01 : f32
    %25 = vector.broadcast %cst_18 : f32 to vector<1x16x16xf32>
    %26 = arith.mulf %24, %25 : vector<1x16x16xf32>
    %cst_19 = arith.constant dense<0xFF800000> : vector<1x16xf32>
    %27 = vector.multi_reduction <maximumf>, %26, %cst_19 [2] : vector<1x16x16xf32> to vector<1x16xf32>
    %28 = vector.shape_cast %27 : vector<1x16xf32> to vector<1x16x1xf32>
    %29 = vector.broadcast %28 : vector<1x16x1xf32> to vector<1x16x16xf32>
    %30 = arith.subf %26, %29 : vector<1x16x16xf32>
    %31 = math.exp %30 : vector<1x16x16xf32>
    %cst_20 = arith.constant dense<0.000000e+00> : vector<1x16xf32>
    %32 = vector.multi_reduction <add>, %31, %cst_20 [2] : vector<1x16x16xf32> to vector<1x16xf32>
    %33 = vector.shape_cast %32 : vector<1x16xf32> to vector<1x16x1xf32>
    %34 = vector.broadcast %33 : vector<1x16x1xf32> to vector<1x16x16xf32>
    %35 = arith.divf %31, %34 : vector<1x16x16xf32>
    %36 = arith.addf %17, %35 : vector<1x16x16xf32>
    "tpu.trace_start"() <{level = 10 : i32, message = "bts,bsd->btd"}> : () -> ()
    %cst_21 = arith.constant dense<0.000000e+00> : vector<1x16x16xf32>
    %37 = tpu.matmul %35, %23, %cst_21 {dimension_numbers = #tpu.dot_dimension_numbers<[2], [1], [1], [2], [0, 0, 0, 1, 1, 2], [0], [0]>} : vector<1x16x16xf32>, vector<1x16x16xf32>, vector<1x16x16xf32> -> vector<1x16x16xf32>
    "tpu.trace_stop"() : () -> ()
    %38 = vector.extract_strided_slice %6 {offsets = [0, 16], sizes = [16, 16], strides = [1, 1]} : vector<16x64xf32> to vector<16x16xf32>
    %39 = vector.shape_cast %38 : vector<16x16xf32> to vector<1x16x16xf32>
    %40 = vector.extract_strided_slice %11 {offsets = [0, 16], sizes = [16, 16], strides = [1, 1]} : vector<16x64xf32> to vector<16x16xf32>
    %41 = vector.shape_cast %40 : vector<16x16xf32> to vector<1x16x16xf32>
    %42 = vector.extract_strided_slice %16 {offsets = [0, 16], sizes = [16, 16], strides = [1, 1]} : vector<16x64xf32> to vector<16x16xf32>
    %43 = vector.shape_cast %42 : vector<16x16xf32> to vector<1x16x16xf32>
    "tpu.trace_start"() <{level = 10 : i32, message = "btd,bsd->bts"}> : () -> ()
    %cst_22 = arith.constant dense<0.000000e+00> : vector<1x16x16xf32>
    %44 = tpu.matmul %39, %41, %cst_22 {dimension_numbers = #tpu.dot_dimension_numbers<[2], [2], [1], [1], [0, 0, 0, 1, 1, 1], [0], [0]>} : vector<1x16x16xf32>, vector<1x16x16xf32>, vector<1x16x16xf32> -> vector<1x16x16xf32>
    "tpu.trace_stop"() : () -> ()
    %cst_23 = arith.constant 2.500000e-01 : f32
    %45 = vector.broadcast %cst_23 : f32 to vector<1x16x16xf32>
    %46 = arith.mulf %44, %45 : vector<1x16x16xf32>
    %cst_24 = arith.constant dense<0xFF800000> : vector<1x16xf32>
    %47 = vector.multi_reduction <maximumf>, %46, %cst_24 [2] : vector<1x16x16xf32> to vector<1x16xf32>
    %48 = vector.shape_cast %47 : vector<1x16xf32> to vector<1x16x1xf32>
    %49 = vector.broadcast %48 : vector<1x16x1xf32> to vector<1x16x16xf32>
    %50 = arith.subf %46, %49 : vector<1x16x16xf32>
    %51 = math.exp %50 : vector<1x16x16xf32>
    %cst_25 = arith.constant dense<0.000000e+00> : vector<1x16xf32>
    %52 = vector.multi_reduction <add>, %51, %cst_25 [2] : vector<1x16x16xf32> to vector<1x16xf32>
    %53 = vector.shape_cast %52 : vector<1x16xf32> to vector<1x16x1xf32>
    %54 = vector.broadcast %53 : vector<1x16x1xf32> to vector<1x16x16xf32>
    %55 = arith.divf %51, %54 : vector<1x16x16xf32>
    %56 = arith.addf %36, %55 : vector<1x16x16xf32>
    "tpu.trace_start"() <{level = 10 : i32, message = "bts,bsd->btd"}> : () -> ()
    %cst_26 = arith.constant dense<0.000000e+00> : vector<1x16x16xf32>
    %57 = tpu.matmul %55, %43, %cst_26 {dimension_numbers = #tpu.dot_dimension_numbers<[2], [1], [1], [2], [0, 0, 0, 1, 1, 2], [0], [0]>} : vector<1x16x16xf32>, vector<1x16x16xf32>, vector<1x16x16xf32> -> vector<1x16x16xf32>
    "tpu.trace_stop"() : () -> ()
    %58 = vector.extract_strided_slice %6 {offsets = [0, 32], sizes = [16, 16], strides = [1, 1]} : vector<16x64xf32> to vector<16x16xf32>
    %59 = vector.shape_cast %58 : vector<16x16xf32> to vector<1x16x16xf32>
    %60 = vector.extract_strided_slice %11 {offsets = [0, 32], sizes = [16, 16], strides = [1, 1]} : vector<16x64xf32> to vector<16x16xf32>
    %61 = vector.shape_cast %60 : vector<16x16xf32> to vector<1x16x16xf32>
    %62 = vector.extract_strided_slice %16 {offsets = [0, 32], sizes = [16, 16], strides = [1, 1]} : vector<16x64xf32> to vector<16x16xf32>
    %63 = vector.shape_cast %62 : vector<16x16xf32> to vector<1x16x16xf32>
    "tpu.trace_start"() <{level = 10 : i32, message = "btd,bsd->bts"}> : () -> ()
    %cst_27 = arith.constant dense<0.000000e+00> : vector<1x16x16xf32>
    %64 = tpu.matmul %59, %61, %cst_27 {dimension_numbers = #tpu.dot_dimension_numbers<[2], [2], [1], [1], [0, 0, 0, 1, 1, 1], [0], [0]>} : vector<1x16x16xf32>, vector<1x16x16xf32>, vector<1x16x16xf32> -> vector<1x16x16xf32>
    "tpu.trace_stop"() : () -> ()
    %cst_28 = arith.constant 2.500000e-01 : f32
    %65 = vector.broadcast %cst_28 : f32 to vector<1x16x16xf32>
    %66 = arith.mulf %64, %65 : vector<1x16x16xf32>
    %cst_29 = arith.constant dense<0xFF800000> : vector<1x16xf32>
    %67 = vector.multi_reduction <maximumf>, %66, %cst_29 [2] : vector<1x16x16xf32> to vector<1x16xf32>
    %68 = vector.shape_cast %67 : vector<1x16xf32> to vector<1x16x1xf32>
    %69 = vector.broadcast %68 : vector<1x16x1xf32> to vector<1x16x16xf32>
    %70 = arith.subf %66, %69 : vector<1x16x16xf32>
    %71 = math.exp %70 : vector<1x16x16xf32>
    %cst_30 = arith.constant dense<0.000000e+00> : vector<1x16xf32>
    %72 = vector.multi_reduction <add>, %71, %cst_30 [2] : vector<1x16x16xf32> to vector<1x16xf32>
    %73 = vector.shape_cast %72 : vector<1x16xf32> to vector<1x16x1xf32>
    %74 = vector.broadcast %73 : vector<1x16x1xf32> to vector<1x16x16xf32>
    %75 = arith.divf %71, %74 : vector<1x16x16xf32>
    %76 = arith.addf %56, %75 : vector<1x16x16xf32>
    "tpu.trace_start"() <{level = 10 : i32, message = "bts,bsd->btd"}> : () -> ()
    %cst_31 = arith.constant dense<0.000000e+00> : vector<1x16x16xf32>
    %77 = tpu.matmul %75, %63, %cst_31 {dimension_numbers = #tpu.dot_dimension_numbers<[2], [1], [1], [2], [0, 0, 0, 1, 1, 2], [0], [0]>} : vector<1x16x16xf32>, vector<1x16x16xf32>, vector<1x16x16xf32> -> vector<1x16x16xf32>
    "tpu.trace_stop"() : () -> ()
    %78 = vector.extract_strided_slice %6 {offsets = [0, 48], sizes = [16, 16], strides = [1, 1]} : vector<16x64xf32> to vector<16x16xf32>
    %79 = vector.shape_cast %78 : vector<16x16xf32> to vector<1x16x16xf32>
    %80 = vector.extract_strided_slice %11 {offsets = [0, 48], sizes = [16, 16], strides = [1, 1]} : vector<16x64xf32> to vector<16x16xf32>
    %81 = vector.shape_cast %80 : vector<16x16xf32> to vector<1x16x16xf32>
    %82 = vector.extract_strided_slice %16 {offsets = [0, 48], sizes = [16, 16], strides = [1, 1]} : vector<16x64xf32> to vector<16x16xf32>
    %83 = vector.shape_cast %82 : vector<16x16xf32> to vector<1x16x16xf32>
    "tpu.trace_start"() <{level = 10 : i32, message = "btd,bsd->bts"}> : () -> ()
    %cst_32 = arith.constant dense<0.000000e+00> : vector<1x16x16xf32>
    %84 = tpu.matmul %79, %81, %cst_32 {dimension_numbers = #tpu.dot_dimension_numbers<[2], [2], [1], [1], [0, 0, 0, 1, 1, 1], [0], [0]>} : vector<1x16x16xf32>, vector<1x16x16xf32>, vector<1x16x16xf32> -> vector<1x16x16xf32>
    "tpu.trace_stop"() : () -> ()
    %cst_33 = arith.constant 2.500000e-01 : f32
    %85 = vector.broadcast %cst_33 : f32 to vector<1x16x16xf32>
    %86 = arith.mulf %84, %85 : vector<1x16x16xf32>
    %cst_34 = arith.constant dense<0xFF800000> : vector<1x16xf32>
    %87 = vector.multi_reduction <maximumf>, %86, %cst_34 [2] : vector<1x16x16xf32> to vector<1x16xf32>
    %88 = vector.shape_cast %87 : vector<1x16xf32> to vector<1x16x1xf32>
    %89 = vector.broadcast %88 : vector<1x16x1xf32> to vector<1x16x16xf32>
    %90 = arith.subf %86, %89 : vector<1x16x16xf32>
    %91 = math.exp %90 : vector<1x16x16xf32>
    %cst_35 = arith.constant dense<0.000000e+00> : vector<1x16xf32>
    %92 = vector.multi_reduction <add>, %91, %cst_35 [2] : vector<1x16x16xf32> to vector<1x16xf32>
    %93 = vector.shape_cast %92 : vector<1x16xf32> to vector<1x16x1xf32>
    %94 = vector.broadcast %93 : vector<1x16x1xf32> to vector<1x16x16xf32>
    %95 = arith.divf %91, %94 : vector<1x16x16xf32>
    %96 = arith.addf %76, %95 : vector<1x16x16xf32>
    "tpu.trace_start"() <{level = 10 : i32, message = "bts,bsd->btd"}> : () -> ()
    %cst_36 = arith.constant dense<0.000000e+00> : vector<1x16x16xf32>
    %97 = tpu.matmul %95, %83, %cst_36 {dimension_numbers = #tpu.dot_dimension_numbers<[2], [1], [1], [2], [0, 0, 0, 1, 1, 2], [0], [0]>} : vector<1x16x16xf32>, vector<1x16x16xf32>, vector<1x16x16xf32> -> vector<1x16x16xf32>
    "tpu.trace_stop"() : () -> ()
    %98 = tpu.concatenate %37, %57, %77, %97 in 2 : vector<1x16x16xf32>, vector<1x16x16xf32>, vector<1x16x16xf32>, vector<1x16x16xf32> -> vector<1x16x64xf32>
    %99 = vector.shape_cast %98 : vector<1x16x64xf32> to vector<16x64xf32>
    %c0_37 = arith.constant 0 : index
    %c0_38 = arith.constant 0 : index
    %100 = vector.load %arg8[%c0_37, %c0_38] : memref<64x64xf32, #tpu.memory_space<vmem>>, vector<64x64xf32>
    %cst_39 = arith.constant dense<0.000000e+00> : vector<16x64xf32>
    %101 = tpu.matmul %99, %100, %cst_39 {dimension_numbers = #tpu.dot_dimension_numbers<[1], [0], [0], [1], [0, 0, 1, 1], [], []>} : vector<16x64xf32>, vector<64x64xf32>, vector<16x64xf32> -> vector<16x64xf32>
    %c0_40 = arith.constant 0 : index
    %c0_41 = arith.constant 0 : index
    %102 = vector.load %arg9[%c0_40, %c0_41] : memref<1x64xf32, #tpu.memory_space<vmem>>, vector<1x64xf32>
    %103 = vector.broadcast %102 : vector<1x64xf32> to vector<16x64xf32>
    %104 = arith.addf %101, %103 : vector<16x64xf32>
    %105 = vector.shape_cast %104 : vector<16x64xf32> to vector<1x16x64xf32>
    %c0_42 = arith.constant 0 : index
    %c0_43 = arith.constant 0 : index
    %c0_44 = arith.constant 0 : index
    %106 = vector.load %arg10[%c0_42, %c0_43, %c0_44] : memref<1x16x64xf32, #tpu.memory_space<vmem>>, vector<1x16x64xf32>
    tpu.vector_store %arg10[%c0_42, %c0_43, %c0_44], %105 {strides = array<i32>} : memref<1x16x64xf32, #tpu.memory_space<vmem>>, vector<1x16x64xf32>,
    %cst_45 = arith.constant 2.500000e-01 : f32
    %107 = vector.broadcast %cst_45 : f32 to vector<1x16x16xf32>
    %108 = arith.mulf %96, %107 : vector<1x16x16xf32>
    %c0_46 = arith.constant 0 : index
    %c0_47 = arith.constant 0 : index
    %c0_48 = arith.constant 0 : index
    %109 = vector.load %arg11[%c0_46, %c0_47, %c0_48] : memref<1x16x16xf32, #tpu.memory_space<vmem>>, vector<1x16x16xf32>
    tpu.vector_store %arg11[%c0_46, %c0_47, %c0_48], %108 {strides = array<i32>} : memref<1x16x16xf32, #tpu.memory_space<vmem>>, vector<1x16x16xf32>,
    return
  }
  func.func @transform_0(%arg0: i32) -> (i32, i32, i32) {
    %c0_i32 = arith.constant 0 : i32
    %c0_i32_0 = arith.constant 0 : i32
    %c0_i32_1 = arith.constant 0 : i32
    return %arg0, %c0_i32, %c0_i32_0 : i32, i32, i32
  }
  func.func @transform_1(%arg0: i32) -> (i32, i32) {
    %c0_i32 = arith.constant 0 : i32
    %c0_i32_0 = arith.constant 0 : i32
    %c0_i32_1 = arith.constant 0 : i32
    return %c0_i32, %c0_i32_0 : i32, i32
  }
  func.func @transform_2(%arg0: i32) -> (i32, i32) {
    %c0_i32 = arith.constant 0 : i32
    %c0_i32_0 = arith.constant 0 : i32
    %c0_i32_1 = arith.constant 0 : i32
    return %c0_i32, %c0_i32_0 : i32, i32
  }
  func.func @transform_3(%arg0: i32) -> (i32, i32) {
    %c0_i32 = arith.constant 0 : i32
    %c0_i32_0 = arith.constant 0 : i32
    %c0_i32_1 = arith.constant 0 : i32
    return %c0_i32, %c0_i32_0 : i32, i32
  }
  func.func @transform_4(%arg0: i32) -> (i32, i32) {
    %c0_i32 = arith.constant 0 : i32
    %c0_i32_0 = arith.constant 0 : i32
    %c0_i32_1 = arith.constant 0 : i32
    return %c0_i32, %c0_i32_0 : i32, i32
  }
  func.func @transform_5(%arg0: i32) -> (i32, i32) {
    %c0_i32 = arith.constant 0 : i32
    %c0_i32_0 = arith.constant 0 : i32
    %c0_i32_1 = arith.constant 0 : i32
    return %c0_i32, %c0_i32_0 : i32, i32
  }
  func.func @transform_6(%arg0: i32) -> (i32, i32) {
    %c0_i32 = arith.constant 0 : i32
    %c0_i32_0 = arith.constant 0 : i32
    %c0_i32_1 = arith.constant 0 : i32
    return %c0_i32, %c0_i32_0 : i32, i32
  }
  func.func @transform_7(%arg0: i32) -> (i32, i32) {
    %c0_i32 = arith.constant 0 : i32
    %c0_i32_0 = arith.constant 0 : i32
    %c0_i32_1 = arith.constant 0 : i32
    return %c0_i32, %c0_i32_0 : i32, i32
  }
  func.func @transform_8(%arg0: i32) -> (i32, i32) {
    %c0_i32 = arith.constant 0 : i32
    %c0_i32_0 = arith.constant 0 : i32
    %c0_i32_1 = arith.constant 0 : i32
    return %c0_i32, %c0_i32_0 : i32, i32
  }
  func.func @transform_9(%arg0: i32) -> (i32, i32, i32) {
    %c0_i32 = arith.constant 0 : i32
    %c0_i32_0 = arith.constant 0 : i32
    %c0_i32_1 = arith.constant 0 : i32
    return %arg0, %c0_i32, %c0_i32_0 : i32, i32, i32
  }
  func.func @transform_10(%arg0: i32) -> (i32, i32, i32) {
    %c0_i32 = arith.constant 0 : i32
    %c0_i32_0 = arith.constant 0 : i32
    %c0_i32_1 = arith.constant 0 : i32
    return %arg0, %c0_i32, %c0_i32_0 : i32, i32, i32
  }
}

</mosaic_0001>

<llo_original>
// kernel: tpu_custom_call.1
$region0: #{tpu_custom_call.1}
  #allocation0 [shape = 'u32[]', space=smem, size = 0x4, offset = 0x4, fixed_abs, tag = 'smem constant byte address 0x4 - core index']
  #allocation1 [shape = 'u32[72,128]{1,0:T(1,128)}', space=vmem, size = 0x9000, scoped, tag = 'internal scratch']
  %s0 = inlined_call_operand.hbm [shape: f32[2,16,64], index: 0, kind: input, shape index: {}]
  %s1 = inlined_call_operand.hbm [shape: f32[64,64], index: 1, kind: input, shape index: {}]
  %s2 = inlined_call_operand.vmem [shape: f32[1,64], index: 2, kind: input, shape index: {}]
  %s3 = inlined_call_operand.hbm [shape: f32[64,64], index: 3, kind: input, shape index: {}]
  %s4 = inlined_call_operand.vmem [shape: f32[1,64], index: 4, kind: input, shape index: {}]
  %s5 = inlined_call_operand.hbm [shape: f32[64,64], index: 5, kind: input, shape index: {}]
  %s6 = inlined_call_operand.vmem [shape: f32[1,64], index: 6, kind: input, shape index: {}]
  %s7 = inlined_call_operand.hbm [shape: f32[64,64], index: 7, kind: input, shape index: {}]
  %s8 = inlined_call_operand.vmem [shape: f32[1,64], index: 8, kind: input, shape index: {}]
  %s9 = inlined_call_operand.hbm [shape: f32[2,16,64], index: 9, kind: output, shape index: {0}]
  %s10 = inlined_call_operand.hbm [shape: f32[2,16,16], index: 10, kind: output, shape index: {1}]
  %11 = xla_tuple %s9, %s10
  %s12 = sld [smem:[#allocation0]]
  $region97: #{tpu_custom_call.1} parent=0
    _
  %s14 = ssub.s32 1, %s12
  %s15 = scalar_select 0, %s14, %s12
  $region1: #{tpu_custom_call.1} parent=0
    #allocation2 [shape = 'u8[16384]{0}', space=vmem, size = 0x4000, scoped, tag = 'input window, operand 0']
    #allocation3 [shape = 's32[2]{0}', space=sflag, size = 0x8, scoped, tag = 'scoped memory for tpu_custom_call.1']
    #allocation4 [shape = 's32[2]{0}', space=sflag, size = 0x8, scoped, tag = 'scoped memory for tpu_custom_call.1']
    #allocation5 [shape = 'u8[32768]{0}', space=vmem, size = 0x8000, scoped, tag = 'input window, operand 1, single buffered']
    #allocation6 [shape = 's32[1]{0}', space=sflag, size = 0x4, scoped, tag = 'scoped memory for tpu_custom_call.1']
    #allocation7 [shape = 'u8[32768]{0}', space=vmem, size = 0x8000, scoped, tag = 'input window, operand 3, single buffered']
    #allocation8 [shape = 'u8[32768]{0}', space=vmem, size = 0x8000, scoped, tag = 'input window, operand 5, single buffered']
    #allocation9 [shape = 's32[1]{0}', space=sflag, size = 0x4, scoped, tag = 'scoped memory for tpu_custom_call.1']
    #allocation10 [shape = 'u8[32768]{0}', space=vmem, size = 0x8000, scoped, tag = 'input window, operand 7, single buffered']
    #allocation11 [shape = 'u8[16384]{0}', space=vmem, size = 0x4000, scoped, tag = 'output window, operand 0']
    #allocation12 [shape = 'u8[16384]{0}', space=vmem, size = 0x4000, scoped, tag = 'output window, operand 1']
    #allocation13 [shape = 's32[2]{0}', space=sflag, size = 0x8, scoped, tag = 'scoped memory for tpu_custom_call.1']
    %16 = vsyncpa [#allocation3], 0
    %s17 = scalar_lea.sflag [#allocation3], 1
    %18 = vsyncpa %s17, 0
    %19 = vsyncpa [#allocation6], 0
    %20 = vsyncpa [#allocation9], 0
    %21 = vsyncpa [#allocation4], 0
    %s22 = scalar_lea.sflag [#allocation4], 1
    %23 = vsyncpa %s22, 0
    %24 = vsyncpa [#allocation13], 0
    %s25 = scalar_lea.sflag [#allocation13], 1
    %26 = vsyncpa %s25, 0
    loop: start=0, step=1, limit=4
    $region2: #{tpu_custom_call.1} parent=1 // loop_pre_header
      _
    $region3: #{tpu_custom_call.1} parent=1 // loop_header
      %s28 = sphi 0, %s32
      %p29 = scmp.ge.s32.totalorder %s28, 4
      %s38 = sphi 0, %s40
      %s41 = sphi 0, %s38
      %s42 = sphi 0, %s41
      %s58 = sphi 0, %s42
      %s62 = sphi 0, %s62
      %s64 = sphi 0, %s62
      %s65 = sphi 0, %s64
      %s79 = sphi 0, %s65
      %s83 = sphi 0, %s83
      %s85 = sphi 0, %s83
      %s86 = sphi 0, %s85
      %s100 = sphi 0, %s86
      %s104 = sphi 0, %s104
      %s106 = sphi 0, %s104
      %s107 = sphi 0, %s106
      %s121 = sphi 0, %s107
      %s125 = sphi 0, %s125
      %s127 = sphi 0, %s125
      %s128 = sphi 0, %s127
      %s142 = sphi 0, %s128
      %s146 = sphi 0, %s146
      %s148 = sphi 0, %s146
      %s149 = sphi 0, %s148
      %s163 = sphi 0, %s149
      %s167 = sphi 0, %s167
      %s169 = sphi 0, %s167
      %s170 = sphi 0, %s169
      %s184 = sphi 0, %s170
      %s188 = sphi 0, %s188
      %s190 = sphi 0, %s188
      %s191 = sphi 0, %s190
      %s205 = sphi 0, %s191
      %s209 = sphi 0, %s209
      %s211 = sphi 0, %s209
      %s212 = sphi 0, %s211
      %s226 = sphi 0, %s212
      %s232 = sphi 0, %s234
      %s235 = sphi 0, %s232
      %s236 = sphi 0, %s235
      %s252 = sphi 0, %s236
      %s258 = sphi 0, %s260
      %s261 = sphi 0, %s258
      %s262 = sphi 0, %s261
      %s278 = sphi 0, %s262
    $region4: #{tpu_custom_call.1} parent=1 // loop_header_branch
      %31 = sbr.rel (%p29) target = $region8
    $region5: #{tpu_custom_call.1} parent=1 // loop_body
      %s33 = ssub.s32 %s28, 1
      %s34 = ssub.s32 %s28, 2
      %s35 = sadd.s32 %s28, 1
      %s36 = ssub.s32 %s28, %s35
      %p37 = scmp.eq.s32.totalorder %s36, 0
      %s39 = sadd.s32 %s38, 1
      %s40 = scalar_select %p37, %s38, %s39
      %p43 = pneg %p37
      %p44 = scmp.eq.s32.totalorder %s28, 1
      %p45 = por %p43, %p44
      %p46 = scmp.ne.s32.totalorder %s38, %s41
      %p47 = scmp.eq.s32.totalorder %s28, 0
      %p48 = por %p46, %p47
      %p49 = scmp.ne.s32.totalorder %s38, %s41
      %p50 = scmp.eq.s32.totalorder %s33, 1
      %p51 = por %p49, %p50
      %p52 = scmp.ne.s32.totalorder %s41, %s42
      %p53 = scmp.eq.s32.totalorder %s33, 0
      %p54 = por %p52, %p53
      %p55 = scmp.ne.s32.totalorder %s41, %s42
      %p56 = scmp.eq.s32.totalorder %s34, 1
      %p57 = por %p55, %p56
      %p59 = scmp.ne.s32.totalorder %s42, %s58
      %p60 = scmp.eq.s32.totalorder %s34, 0
      %p61 = por %p59, %p60
      %s63 = sadd.s32 %s62, 1
      %p66 = scmp.eq.s32.totalorder %s28, 1
      %p67 = scmp.ne.s32.totalorder %s62, %s64
      %p68 = scmp.eq.s32.totalorder %s28, 0
      %p69 = por %p67, %p68
      %p70 = scmp.ne.s32.totalorder %s62, %s64
      %p71 = scmp.eq.s32.totalorder %s33, 1
      %p72 = por %p70, %p71
      %p73 = scmp.ne.s32.totalorder %s64, %s65
      %p74 = scmp.eq.s32.totalorder %s33, 0
      %p75 = por %p73, %p74
      %p76 = scmp.ne.s32.totalorder %s64, %s65
      %p77 = scmp.eq.s32.totalorder %s34, 1
      %p78 = por %p76, %p77
      %p80 = scmp.ne.s32.totalorder %s65, %s79
      %p81 = scmp.eq.s32.totalorder %s34, 0
      %p82 = por %p80, %p81
      %s84 = sadd.s32 %s83, 1
      %p87 = scmp.eq.s32.totalorder %s28, 1
      %p88 = scmp.ne.s32.totalorder %s83, %s85
      %p89 = scmp.eq.s32.totalorder %s28, 0
      %p90 = por %p88, %p89
      %p91 = scmp.ne.s32.totalorder %s83, %s85
      %p92 = scmp.eq.s32.totalorder %s33, 1
      %p93 = por %p91, %p92
      %p94 = scmp.ne.s32.totalorder %s85, %s86
      %p95 = scmp.eq.s32.totalorder %s33, 0
      %p96 = por %p94, %p95
      %p97 = scmp.ne.s32.totalorder %s85, %s86
      %p98 = scmp.eq.s32.totalorder %s34, 1
      %p99 = por %p97, %p98
      %p101 = scmp.ne.s32.totalorder %s86, %s100
      %p102 = scmp.eq.s32.totalorder %s34, 0
      %p103 = por %p101, %p102
      %s105 = sadd.s32 %s104, 1
      %p108 = scmp.eq.s32.totalorder %s28, 1
      %p109 = scmp.ne.s32.totalorder %s104, %s106
      %p110 = scmp.eq.s32.totalorder %s28, 0
      %p111 = por %p109, %p110
      %p112 = scmp.ne.s32.totalorder %s104, %s106
      %p113 = scmp.eq.s32.totalorder %s33, 1
      %p114 = por %p112, %p113
      %p115 = scmp.ne.s32.totalorder %s106, %s107
      %p116 = scmp.eq.s32.totalorder %s33, 0
      %p117 = por %p115, %p116
      %p118 = scmp.ne.s32.totalorder %s106, %s107
      %p119 = scmp.eq.s32.totalorder %s34, 1
      %p120 = por %p118, %p119
      %p122 = scmp.ne.s32.totalorder %s107, %s121
      %p123 = scmp.eq.s32.totalorder %s34, 0
      %p124 = por %p122, %p123
      %s126 = sadd.s32 %s125, 1
      %p129 = scmp.eq.s32.totalorder %s28, 1
      %p130 = scmp.ne.s32.totalorder %s125, %s127
      %p131 = scmp.eq.s32.totalorder %s28, 0
      %p132 = por %p130, %p131
      %p133 = scmp.ne.s32.totalorder %s125, %s127
      %p134 = scmp.eq.s32.totalorder %s33, 1
      %p135 = por %p133, %p134
      %p136 = scmp.ne.s32.totalorder %s127, %s128
      %p137 = scmp.eq.s32.totalorder %s33, 0
      %p138 = por %p136, %p137
      %p139 = scmp.ne.s32.totalorder %s127, %s128
      %p140 = scmp.eq.s32.totalorder %s34, 1
      %p141 = por %p139, %p140
      %p143 = scmp.ne.s32.totalorder %s128, %s142
      %p144 = scmp.eq.s32.totalorder %s34, 0
      %p145 = por %p143, %p144
      %s147 = sadd.s32 %s146, 1
      %p150 = scmp.eq.s32.totalorder %s28, 1
      %p151 = scmp.ne.s32.totalorder %s146, %s148
      %p152 = scmp.eq.s32.totalorder %s28, 0
      %p153 = por %p151, %p152
      %p154 = scmp.ne.s32.totalorder %s146, %s148
      %p155 = scmp.eq.s32.totalorder %s33, 1
      %p156 = por %p154, %p155
      %p157 = scmp.ne.s32.totalorder %s148, %s149
      %p158 = scmp.eq.s32.totalorder %s33, 0
      %p159 = por %p157, %p158
      %p160 = scmp.ne.s32.totalorder %s148, %s149
      %p161 = scmp.eq.s32.totalorder %s34, 1
      %p162 = por %p160, %p161
      %p164 = scmp.ne.s32.totalorder %s149, %s163
      %p165 = scmp.eq.s32.totalorder %s34, 0
      %p166 = por %p164, %p165
      %s168 = sadd.s32 %s167, 1
      %p171 = scmp.eq.s32.totalorder %s28, 1
      %p172 = scmp.ne.s32.totalorder %s167, %s169
      %p173 = scmp.eq.s32.totalorder %s28, 0
      %p174 = por %p172, %p173
      %p175 = scmp.ne.s32.totalorder %s167, %s169
      %p176 = scmp.eq.s32.totalorder %s33, 1
      %p177 = por %p175, %p176
      %p178 = scmp.ne.s32.totalorder %s169, %s170
      %p179 = scmp.eq.s32.totalorder %s33, 0
      %p180 = por %p178, %p179
      %p181 = scmp.ne.s32.totalorder %s169, %s170
      %p182 = scmp.eq.s32.totalorder %s34, 1
      %p183 = por %p181, %p182
      %p185 = scmp.ne.s32.totalorder %s170, %s184
      %p186 = scmp.eq.s32.totalorder %s34, 0
      %p187 = por %p185, %p186
      %s189 = sadd.s32 %s188, 1
      %p192 = scmp.eq.s32.totalorder %s28, 1
      %p193 = scmp.ne.s32.totalorder %s188, %s190
      %p194 = scmp.eq.s32.totalorder %s28, 0
      %p195 = por %p193, %p194
      %p196 = scmp.ne.s32.totalorder %s188, %s190
      %p197 = scmp.eq.s32.totalorder %s33, 1
      %p198 = por %p196, %p197
      %p199 = scmp.ne.s32.totalorder %s190, %s191
      %p200 = scmp.eq.s32.totalorder %s33, 0
      %p201 = por %p199, %p200
      %p202 = scmp.ne.s32.totalorder %s190, %s191
      %p203 = scmp.eq.s32.totalorder %s34, 1
      %p204 = por %p202, %p203
      %p206 = scmp.ne.s32.totalorder %s191, %s205
      %p207 = scmp.eq.s32.totalorder %s34, 0
      %p208 = por %p206, %p207
      %s210 = sadd.s32 %s209, 1
      %p213 = scmp.eq.s32.totalorder %s28, 1
      %p214 = scmp.ne.s32.totalorder %s209, %s211
      %p215 = scmp.eq.s32.totalorder %s28, 0
      %p216 = por %p214, %p215
      %p217 = scmp.ne.s32.totalorder %s209, %s211
      %p218 = scmp.eq.s32.totalorder %s33, 1
      %p219 = por %p217, %p218
      %p220 = scmp.ne.s32.totalorder %s211, %s212
      %p221 = scmp.eq.s32.totalorder %s33, 0
      %p222 = por %p220, %p221
      %p223 = scmp.ne.s32.totalorder %s211, %s212
      %p224 = scmp.eq.s32.totalorder %s34, 1
      %p225 = por %p223, %p224
      %p227 = scmp.ne.s32.totalorder %s212, %s226
      %p228 = scmp.eq.s32.totalorder %s34, 0
      %p229 = por %p227, %p228
      %s230 = ssub.s32 %s28, %s35
      %p231 = scmp.eq.s32.totalorder %s230, 0
      %s233 = sadd.s32 %s232, 1
      %s234 = scalar_select %p231, %s232, %s233
      %p237 = pneg %p231
      %p238 = scmp.eq.s32.totalorder %s28, 1
      %p239 = por %p237, %p238
      %p240 = scmp.ne.s32.totalorder %s232, %s235
      %p241 = scmp.eq.s32.totalorder %s28, 0
      %p242 = por %p240, %p241
      %p243 = scmp.ne.s32.totalorder %s232, %s235
      %p244 = scmp.eq.s32.totalorder %s33, 1
      %p245 = por %p243, %p244
      %p246 = scmp.ne.s32.totalorder %s235, %s236
      %p247 = scmp.eq.s32.totalorder %s33, 0
      %p248 = por %p246, %p247
      %p249 = scmp.ne.s32.totalorder %s235, %s236
      %p250 = scmp.eq.s32.totalorder %s34, 1
      %p251 = por %p249, %p250
      %p253 = scmp.ne.s32.totalorder %s236, %s252
      %p254 = scmp.eq.s32.totalorder %s34, 0
      %p255 = por %p253, %p254
      %s256 = ssub.s32 %s28, %s35
      %p257 = scmp.eq.s32.totalorder %s256, 0
      %s259 = sadd.s32 %s258, 1
      %s260 = scalar_select %p257, %s258, %s259
      %p263 = pneg %p257
      %p264 = scmp.eq.s32.totalorder %s28, 1
      %p265 = por %p263, %p264
      %p266 = scmp.ne.s32.totalorder %s258, %s261
      %p267 = scmp.eq.s32.totalorder %s28, 0
      %p268 = por %p266, %p267
      %p269 = scmp.ne.s32.totalorder %s258, %s261
      %p270 = scmp.eq.s32.totalorder %s33, 1
      %p271 = por %p269, %p270
      %p272 = scmp.ne.s32.totalorder %s261, %s262
      %p273 = scmp.eq.s32.totalorder %s33, 0
      %p274 = por %p272, %p273
      %p275 = scmp.ne.s32.totalorder %s261, %s262
      %p276 = scmp.eq.s32.totalorder %s34, 1
      %p277 = por %p275, %p276
      %p279 = scmp.ne.s32.totalorder %s262, %s278
      %p280 = scmp.eq.s32.totalorder %s34, 0
      %p281 = por %p279, %p280
      %p282 = scmp.le.s32.totalorder 1, %s28
      %p283 = scmp.lt.s32.totalorder %s28, 3
      %p284 = pnand %p282, %p283
      %p285 = pneg %p284
      // Predicated region
      $region9: #{tpu_custom_call.1} parent=5 // pred_check
        _
      $region10: #{tpu_custom_call.1} parent=5 // pred_check_branch
        %287 = sbr.rel (%p284) target = $region12
      $region11: #{tpu_custom_call.1} parent=5 // pred_region
        %s288 = ssub.s32 %s28, 1
        // Predicated region
        $region13: #{tpu_custom_call.1} parent=11 // pred_check
          %p289 = pneg %p75
        $region14: #{tpu_custom_call.1} parent=11 // pred_check_branch
          %291 = sbr.rel (%p289) target = $region16
        $region15: #{tpu_custom_call.1} parent=11 // pred_region
          %293 = vsyncadd [#allocation6], 0
          %s294 = sshll.u32 %s1, 4
          %s295 = int_to_ptr.hbm [resolvable:$true] %s294
          %s296 = sshll.u32 [#allocation5], 4
          %s297 = int_to_ptr.vmem [resolvable:$true] %s296
          %302 = dma.hbm_to_vmem [thread:$0]  %s295, 1024, %s297, [#allocation6], 128, 128, 8
        $region16: #{tpu_custom_call.1} parent=11 // pred_fallthru
          _
        // Predicated region
        $region17: #{tpu_custom_call.1} parent=11 // pred_check
          %p303 = pneg %p96
        $region18: #{tpu_custom_call.1} parent=11 // pred_check_branch
          %305 = sbr.rel (%p303) target = $region20
        $region19: #{tpu_custom_call.1} parent=11 // pred_region
          _
        $region20: #{tpu_custom_call.1} parent=11 // pred_fallthru
          _
        // Predicated region
        $region21: #{tpu_custom_call.1} parent=11 // pred_check
          %p306 = pneg %p117
        $region22: #{tpu_custom_call.1} parent=11 // pred_check_branch
          %308 = sbr.rel (%p306) target = $region24
        $region23: #{tpu_custom_call.1} parent=11 // pred_region
          %310 = vsyncadd [#allocation6], 0
          %s311 = sshll.u32 %s3, 4
          %s312 = int_to_ptr.hbm [resolvable:$true] %s311
          %s313 = sshll.u32 [#allocation7], 4
          %s314 = int_to_ptr.vmem [resolvable:$true] %s313
          %319 = dma.hbm_to_vmem [thread:$0]  %s312, 1024, %s314, [#allocation6], 128, 128, 8
        $region24: #{tpu_custom_call.1} parent=11 // pred_fallthru
          _
        // Predicated region
        $region25: #{tpu_custom_call.1} parent=11 // pred_check
          %p320 = pneg %p138
        $region26: #{tpu_custom_call.1} parent=11 // pred_check_branch
          %322 = sbr.rel (%p320) target = $region28
        $region27: #{tpu_custom_call.1} parent=11 // pred_region
          _
        $region28: #{tpu_custom_call.1} parent=11 // pred_fallthru
          _
        // Predicated region
        $region29: #{tpu_custom_call.1} parent=11 // pred_check
          %p323 = pneg %p159
        $region30: #{tpu_custom_call.1} parent=11 // pred_check_branch
          %325 = sbr.rel (%p323) target = $region32
        $region31: #{tpu_custom_call.1} parent=11 // pred_region
          %327 = vsyncadd [#allocation9], 0
          %s328 = sshll.u32 %s5, 4
          %s329 = int_to_ptr.hbm [resolvable:$true] %s328
          %s330 = sshll.u32 [#allocation8], 4
          %s331 = int_to_ptr.vmem [resolvable:$true] %s330
          %336 = dma.hbm_to_vmem [thread:$0]  %s329, 1024, %s331, [#allocation9], 128, 128, 8
        $region32: #{tpu_custom_call.1} parent=11 // pred_fallthru
          _
        // Predicated region
        $region33: #{tpu_custom_call.1} parent=11 // pred_check
          %p337 = pneg %p180
        $region34: #{tpu_custom_call.1} parent=11 // pred_check_branch
          %339 = sbr.rel (%p337) target = $region36
        $region35: #{tpu_custom_call.1} parent=11 // pred_region
          _
        $region36: #{tpu_custom_call.1} parent=11 // pred_fallthru
          _
        // Predicated region
        $region37: #{tpu_custom_call.1} parent=11 // pred_check
          %p340 = pneg %p201
        $region38: #{tpu_custom_call.1} parent=11 // pred_check_branch
          %342 = sbr.rel (%p340) target = $region40
        $region39: #{tpu_custom_call.1} parent=11 // pred_region
          %344 = vsyncadd [#allocation9], 0
          %s345 = sshll.u32 %s7, 4
          %s346 = int_to_ptr.hbm [resolvable:$true] %s345
          %s347 = sshll.u32 [#allocation10], 4
          %s348 = int_to_ptr.vmem [resolvable:$true] %s347
          %353 = dma.hbm_to_vmem [thread:$0]  %s346, 1024, %s348, [#allocation9], 128, 128, 8
        $region40: #{tpu_custom_call.1} parent=11 // pred_fallthru
          _
        // Predicated region
        $region41: #{tpu_custom_call.1} parent=11 // pred_check
          %p354 = pneg %p222
        $region42: #{tpu_custom_call.1} parent=11 // pred_check_branch
          %356 = sbr.rel (%p354) target = $region44
        $region43: #{tpu_custom_call.1} parent=11 // pred_region
          _
        $region44: #{tpu_custom_call.1} parent=11 // pred_fallthru
          _
      $region12: #{tpu_custom_call.1} parent=5 // pred_fallthru
        _
      %p357 = scmp.lt.s32.totalorder %s28, 2
      // Predicated region
      $region45: #{tpu_custom_call.1} parent=5 // pred_check
        %p358 = pneg %p357
      $region46: #{tpu_custom_call.1} parent=5 // pred_check_branch
        %360 = sbr.rel (%p358) target = $region48
      $region47: #{tpu_custom_call.1} parent=5 // pred_region
        // Predicated region
        $region49: #{tpu_custom_call.1} parent=47 // pred_check
          %p361 = pneg %p48
        $region50: #{tpu_custom_call.1} parent=47 // pred_check_branch
          %363 = sbr.rel (%p361) target = $region52
        $region51: #{tpu_custom_call.1} parent=47 // pred_region
          %s364 = sand.u32 %s38, 1
          %s365 = scalar_lea.sflag [#allocation3], %s364
          %s366 = sand.u32 %s38, 1
          %s367 = smul.addr %s366, 16
          %s368 = scalar_lea.vmem [#allocation2], %s367
          %370 = vsyncadd %s365, 0
          %s371 = smul.addr %s28, 2
          %s372 = smul.addr %s371, 8
          %s373 = scalar_lea.hbm %s0, %s372
          %s374 = sshll.u32 %s373, 4
          %s375 = int_to_ptr.hbm [resolvable:$true] %s374
          %s376 = sshll.u32 %s368, 4
          %s377 = int_to_ptr.vmem [resolvable:$true] %s376
          %382 = dma.hbm_to_vmem [thread:$0]  %s375, 256, %s377, %s365, 128, 128, 8
        $region52: #{tpu_custom_call.1} parent=47 // pred_fallthru
          _
      $region48: #{tpu_custom_call.1} parent=5 // pred_fallthru
        _
      %p383 = scmp.le.s32.totalorder 1, %s28
      %p384 = scmp.lt.s32.totalorder %s28, 3
      %p385 = pnand %p383, %p384
      %p386 = pneg %p385
      // Predicated region
      $region53: #{tpu_custom_call.1} parent=5 // pred_check
        _
      $region54: #{tpu_custom_call.1} parent=5 // pred_check_branch
        %388 = sbr.rel (%p385) target = $region56
      $region55: #{tpu_custom_call.1} parent=5 // pred_region
        %s389 = ssub.s32 %s28, 1
        %s390 = sand.u32 %s41, 1
        %s391 = scalar_lea.sflag [#allocation3], %s390
        %s392 = sand.u32 %s41, 1
        %s393 = smul.addr %s392, 16
        %s394 = scalar_lea.vmem [#allocation2], %s393
        // Predicated region
        $region57: #{tpu_custom_call.1} parent=55 // pred_check
          %p395 = pneg %p54
        $region58: #{tpu_custom_call.1} parent=55 // pred_check_branch
          %397 = sbr.rel (%p395) target = $region60
        $region59: #{tpu_custom_call.1} parent=55 // pred_region
          %399 = dma.done %s391, 256
        $region60: #{tpu_custom_call.1} parent=55 // pred_fallthru
          _
        // Predicated region
        $region61: #{tpu_custom_call.1} parent=55 // pred_check
          %p400 = pneg %p75
        $region62: #{tpu_custom_call.1} parent=55 // pred_check_branch
          %402 = sbr.rel (%p400) target = $region64
        $region63: #{tpu_custom_call.1} parent=55 // pred_region
          %404 = dma.done [#allocation6], 1024
        $region64: #{tpu_custom_call.1} parent=55 // pred_fallthru
          _
        // Predicated region
        $region65: #{tpu_custom_call.1} parent=55 // pred_check
          %p405 = pneg %p117
        $region66: #{tpu_custom_call.1} parent=55 // pred_check_branch
          %407 = sbr.rel (%p405) target = $region68
        $region67: #{tpu_custom_call.1} parent=55 // pred_region
          %409 = dma.done [#allocation6], 1024
        $region68: #{tpu_custom_call.1} parent=55 // pred_fallthru
          _
        // Predicated region
        $region69: #{tpu_custom_call.1} parent=55 // pred_check
          %p410 = pneg %p159
        $region70: #{tpu_custom_call.1} parent=55 // pred_check_branch
          %412 = sbr.rel (%p410) target = $region72
        $region71: #{tpu_custom_call.1} parent=55 // pred_region
          %414 = dma.done [#allocation9], 1024
        $region72: #{tpu_custom_call.1} parent=55 // pred_fallthru
          _
        // Predicated region
        $region73: #{tpu_custom_call.1} parent=55 // pred_check
          %p415 = pneg %p201
        $region74: #{tpu_custom_call.1} parent=55 // pred_check_branch
          %417 = sbr.rel (%p415) target = $region76
        $region75: #{tpu_custom_call.1} parent=55 // pred_region
          %419 = dma.done [#allocation9], 1024
        $region76: #{tpu_custom_call.1} parent=55 // pred_fallthru
          _
        %s420 = sand.u32 %s41, 1
        %s421 = scalar_lea.sflag [#allocation3], %s420
        %s422 = sand.u32 %s41, 1
        %s423 = smul.addr %s422, 16
        %s424 = scalar_lea.vmem [#allocation2], %s423
        %p425 = pneg %p54
        %p426 = pneg %p51
        %p427 = pneg %p75
        %p428 = pneg %p72
        %p429 = pneg %p96
        %p430 = pneg %p93
        %p431 = pneg %p117
        %p432 = pneg %p114
        %p433 = pneg %p138
        %p434 = pneg %p135
        %p435 = pneg %p159
        %p436 = pneg %p156
        %p437 = pneg %p180
        %p438 = pneg %p177
        %p439 = pneg %p201
        %p440 = pneg %p198
        %p441 = pneg %p222
        %p442 = pneg %p219
        %p443 = pneg %p248
        %p444 = pneg %p245
        %s445 = sand.u32 %s235, 1
        %s446 = scalar_lea.sflag [#allocation4], %s445
        %s447 = sand.u32 %s235, 1
        %s448 = smul.addr %s447, 16
        %s449 = scalar_lea.vmem [#allocation11], %s448
        %p450 = pneg %p274
        %p451 = pneg %p271
        %s452 = sand.u32 %s261, 1
        %s453 = scalar_lea.sflag [#allocation13], %s452
        %s454 = sand.u32 %s261, 1
        %s455 = smul.addr %s454, 16
        %s456 = scalar_lea.vmem [#allocation12], %s455
        %v457 = vld [vmem:[%s394] sm:$0xff]
        %v458 = vld [vmem:[%s394 + $0x8] sm:$0xff]
        %v459 = vld [vmem:[#allocation5] sm:$0xff]
        %v460 = vld [vmem:[#allocation5 + $0x8] sm:$0xff]
        %v461 = vld [vmem:[#allocation5 + $0x10] sm:$0xff]
        %v462 = vld [vmem:[#allocation5 + $0x18] sm:$0xff]
        %v463 = vld [vmem:[#allocation5 + $0x20] sm:$0xff]
        %v464 = vld [vmem:[#allocation5 + $0x28] sm:$0xff]
        %v465 = vld [vmem:[#allocation5 + $0x30] sm:$0xff]
        %v466 = vld [vmem:[#allocation5 + $0x38] sm:$0xff]
        %v467 = vld [vmem:[%s2] sm:$0x1]
        %v469 = vperm.slane %v467, 0
        %vm471 = vcmask 523264
        %v473 = vsel %vm471, %v457, 0
        %v476 = vsel %vm471, %v458, 0
        %478 = vmatpush.msra.mxu0 0.0
        %479 = vmatpush.msra.mxu0 0.0
        %480 = vmatpush.msra.mxu0 0.0
        %481 = vmatpush.msra.mxu0 0.0
        %482 = vmatpush.msra.mxu0 0.0
        %483 = vmatpush.msra.mxu0 0.0
        %484 = vmatpush.msra.mxu0 0.0
        %485 = vmatpush.msra.mxu0 0.0
        %486 = vmatpush.msra.mxu0 %v466
        %487 = vmatpush.msra.mxu0 %v465
        %488 = vmatpush.msra.mxu0 %v464
        %489 = vmatpush.msra.mxu0 %v463
        %490 = vmatpush.msra.mxu0 %v462
        %491 = vmatpush.msra.mxu0 %v461
        %492 = vmatpush.msra.mxu0 %v460
        %493 = vmatpush.msra.mxu0 %v459
        %494 = vmatmul.f32.gmra.mxu0 %v473
        %v495 = vpop.f32.mrf.mxu0
        %v496 = vadd.f32 %v469, %v495
        %497 = vmatmul.f32.gmra.mxu0 %v476
        %v498 = vpop.f32.mrf.mxu0
        %v499 = vadd.f32 %v469, %v498
        %500 = vdwg.mxu0
        %v501 = vld [vmem:[#allocation7] sm:$0xff]
        %v502 = vld [vmem:[#allocation7 + $0x8] sm:$0xff]
        %v503 = vld [vmem:[#allocation7 + $0x10] sm:$0xff]
        %v504 = vld [vmem:[#allocation7 + $0x18] sm:$0xff]
        %v505 = vld [vmem:[#allocation7 + $0x20] sm:$0xff]
        %v506 = vld [vmem:[#allocation7 + $0x28] sm:$0xff]
        %v507 = vld [vmem:[#allocation7 + $0x30] sm:$0xff]
        %v508 = vld [vmem:[#allocation7 + $0x38] sm:$0xff]
        %v509 = vld [vmem:[%s4] sm:$0x1]
        %v511 = vperm.slane %v509, 0
        %513 = vmatpush.msra.mxu0 0.0
        %514 = vmatpush.msra.mxu0 0.0
        %515 = vmatpush.msra.mxu0 0.0
        %516 = vmatpush.msra.mxu0 0.0
        %517 = vmatpush.msra.mxu0 0.0
        %518 = vmatpush.msra.mxu0 0.0
        %519 = vmatpush.msra.mxu0 0.0
        %520 = vmatpush.msra.mxu0 0.0
        %521 = vmatpush.msra.mxu0 %v508
        %522 = vmatpush.msra.mxu0 %v507
        %523 = vmatpush.msra.mxu0 %v506
        %524 = vmatpush.msra.mxu0 %v505
        %525 = vmatpush.msra.mxu0 %v504
        %526 = vmatpush.msra.mxu0 %v503
        %527 = vmatpush.msra.mxu0 %v502
        %528 = vmatpush.msra.mxu0 %v501
        %529 = vmatmul.f32.gmra.mxu0 %v473
        %v530 = vpop.f32.mrf.mxu0
        %v531 = vadd.f32 %v511, %v530
        %532 = vmatmul.f32.gmra.mxu0 %v476
        %v533 = vpop.f32.mrf.mxu0
        %v534 = vadd.f32 %v511, %v533
        %535 = vdwg.mxu0
        %v536 = vld [vmem:[#allocation8] sm:$0xff]
        %v537 = vld [vmem:[#allocation8 + $0x8] sm:$0xff]
        %v538 = vld [vmem:[#allocation8 + $0x10] sm:$0xff]
        %v539 = vld [vmem:[#allocation8 + $0x18] sm:$0xff]
        %v540 = vld [vmem:[#allocation8 + $0x20] sm:$0xff]
        %v541 = vld [vmem:[#allocation8 + $0x28] sm:$0xff]
        %v542 = vld [vmem:[#allocation8 + $0x30] sm:$0xff]
        %v543 = vld [vmem:[#allocation8 + $0x38] sm:$0xff]
        %v544 = vld [vmem:[%s6] sm:$0x1]
        %v546 = vperm.slane %v544, 0
        %548 = vmatpush.msra.mxu0 0.0
        %549 = vmatpush.msra.mxu0 0.0
        %550 = vmatpush.msra.mxu0 0.0
        %551 = vmatpush.msra.mxu0 0.0
        %552 = vmatpush.msra.mxu0 0.0
        %553 = vmatpush.msra.mxu0 0.0
        %554 = vmatpush.msra.mxu0 0.0
        %555 = vmatpush.msra.mxu0 0.0
        %556 = vmatpush.msra.mxu0 %v543
        %557 = vmatpush.msra.mxu0 %v542
        %558 = vmatpush.msra.mxu0 %v541
        %559 = vmatpush.msra.mxu0 %v540
        %560 = vmatpush.msra.mxu0 %v539
        %561 = vmatpush.msra.mxu0 %v538
        %562 = vmatpush.msra.mxu0 %v537
        %563 = vmatpush.msra.mxu0 %v536
        %564 = vmatmul.f32.gmra.mxu0 %v473
        %v565 = vpop.f32.mrf.mxu0
        %v566 = vadd.f32 %v546, %v565
        %567 = vmatmul.f32.gmra.mxu0 %v476
        %v568 = vpop.f32.mrf.mxu0
        %v569 = vadd.f32 %v546, %v568
        %570 = vdwg.mxu0
        %vm571 = vcmask 130048
        %v573 = vsel %vm571, %v496, 0
        %v576 = vsel %vm571, %v499, 0
        %v579 = vsel %vm571, %v531, 0
        %v582 = vsel %vm571, %v534, 0
        %584 = vmatpush.xpose.msra.mxu0 0.0
        %585 = vmatpush.xpose.msra.mxu0 0.0
        %586 = vmatpush.xpose.msra.mxu0 0.0
        %587 = vmatpush.xpose.msra.mxu0 0.0
        %588 = vmatpush.xpose.msra.mxu0 0.0
        %589 = vmatpush.xpose.msra.mxu0 0.0
        %590 = vmatpush.xpose.msra.mxu0 0.0
        %591 = vmatpush.xpose.msra.mxu0 0.0
        %592 = vmatpush.xpose.msra.mxu0 0.0
        %593 = vmatpush.xpose.msra.mxu0 0.0
        %594 = vmatpush.xpose.msra.mxu0 0.0
        %595 = vmatpush.xpose.msra.mxu0 0.0
        %596 = vmatpush.xpose.msra.mxu0 0.0
        %597 = vmatpush.xpose.msra.mxu0 0.0
        %598 = vmatpush.xpose.msra.mxu0 %v582
        %599 = vmatpush.xpose.msra.mxu0 %v579
        %600 = vmatmul.f32.gmra.mxu0 %v573
        %v601 = vpop.f32.mrf.mxu0
        %v602 = vadd.f32 0.0, %v601
        %603 = vmatmul.f32.gmra.mxu0 %v576
        %v604 = vpop.f32.mrf.mxu0
        %v605 = vadd.f32 0.0, %v604
        %606 = vdwg.mxu0
        %v607 = vmul.f32 %v602, 0.25
        %v608 = vmul.f32 %v605, 0.25
        %v609 = vsel %vm571, %v607, -inf
        %610 = vmax.xlane.f32.xlu0 %v609
        %v611 = vpop.xlane.xlu0 %610
        %v612 = vsel %vm571, %v608, -inf
        %613 = vmax.xlane.f32.xlu0 %v612
        %v614 = vpop.xlane.xlu0 %613
        %v615 = vsub.f32 %v607, %v611
        %v616 = vsub.f32 %v608, %v614
        %v617 = vmul.f32 %v615, 1.442695
        %v618 = vpow.pop %v617
        %v619 = vmul.f32 %v616, 1.442695
        %v620 = vpow.pop %v619
        %v621 = vsel %vm571, %v618, 0.0
        %622 = vadd.xlane.f32.xlu0 %v621
        %v623 = vpop.xlane.xlu0 %622
        %v624 = vsel %vm571, %v620, 0.0
        %625 = vadd.xlane.f32.xlu0 %v624
        %v626 = vpop.xlane.xlu0 %625
        %v627 = vrcp.pop %v623
        %v628 = vmul.f32 %v623, %v627
        %v629 = vsub.f32 1.0, %v628
        %v630 = vmul.f32 %v627, %v629
        %v631 = vadd.f32 %v627, %v630
        %vm632 = vweird.f32 %v623
        %vm633 = vweird.f32 %v627
        %vm634 = vmor %vm632, %vm633
        %v635 = vsel %vm634, %v627, %v631
        %v636 = vand.u32 2147483647, %v623
        %vm637 = vcmp.eq.f32.partialorder %v636, 8.507059e+37
        %v638 = vand.u32 %v623, 2147483648
        %v639 = vor.u32 1.1754944e-38, %v638
        %v640 = vsel %vm637, %v639, %v635
        %v641 = vmul.f32 %v618, %v640
        %v642 = vrcp.pop %v626
        %v643 = vmul.f32 %v626, %v642
        %v644 = vsub.f32 1.0, %v643
        %v645 = vmul.f32 %v642, %v644
        %v646 = vadd.f32 %v642, %v645
        %vm647 = vweird.f32 %v626
        %vm648 = vweird.f32 %v642
        %vm649 = vmor %vm647, %vm648
        %v650 = vsel %vm649, %v642, %v646
        %v651 = vand.u32 2147483647, %v626
        %vm652 = vcmp.eq.f32.partialorder %v651, 8.507059e+37
        %v653 = vand.u32 %v626, 2147483648
        %v654 = vor.u32 1.1754944e-38, %v653
        %v655 = vsel %vm652, %v654, %v650
        %v656 = vmul.f32 %v620, %v655
        %v657 = vadd.f32 %v641, 0.0
        %v658 = vadd.f32 %v656, 0.0
        %v660 = vsel %vm571, %v641, 0
        %v663 = vsel %vm571, %v656, 0
        %665 = vmatpush.msra.mxu0 0.0
        %666 = vmatpush.msra.mxu0 0.0
        %667 = vmatpush.msra.mxu0 0.0
        %668 = vmatpush.msra.mxu0 0.0
        %669 = vmatpush.msra.mxu0 0.0
        %670 = vmatpush.msra.mxu0 0.0
        %671 = vmatpush.msra.mxu0 0.0
        %672 = vmatpush.msra.mxu0 0.0
        %673 = vmatpush.msra.mxu0 0.0
        %674 = vmatpush.msra.mxu0 0.0
        %675 = vmatpush.msra.mxu0 0.0
        %676 = vmatpush.msra.mxu0 0.0
        %677 = vmatpush.msra.mxu0 0.0
        %678 = vmatpush.msra.mxu0 0.0
        %679 = vmatpush.msra.mxu0 %v569
        %680 = vmatpush.msra.mxu0 %v566
        %681 = vmatmul.f32.gmra.mxu0 %v660
        %v682 = vpop.f32.mrf.mxu0
        %v683 = vadd.f32 0.0, %v682
        %684 = vmatmul.f32.gmra.mxu0 %v663
        %v685 = vpop.f32.mrf.mxu0
        %v686 = vadd.f32 0.0, %v685
        %687 = vdwg.mxu0
        %688 = vrot.lane.b32.xlu0 %v496, 112
        %v689 = vpop.permute.xlu0 %688
        %690 = vrot.lane.b32.xlu0 %v499, 112
        %v691 = vpop.permute.xlu0 %690
        %692 = vrot.lane.b32.xlu0 %v531, 112
        %v693 = vpop.permute.xlu0 %692
        %694 = vrot.lane.b32.xlu0 %v534, 112
        %v695 = vpop.permute.xlu0 %694
        %v696 = vsel %vm571, %v689, 0
        %v698 = vsel %vm571, %v691, 0
        %v700 = vsel %vm571, %v693, 0
        %v702 = vsel %vm571, %v695, 0
        %704 = vmatpush.xpose.msra.mxu0 0.0
        %705 = vmatpush.xpose.msra.mxu0 0.0
        %706 = vmatpush.xpose.msra.mxu0 0.0
        %707 = vmatpush.xpose.msra.mxu0 0.0
        %708 = vmatpush.xpose.msra.mxu0 0.0
        %709 = vmatpush.xpose.msra.mxu0 0.0
        %710 = vmatpush.xpose.msra.mxu0 0.0
        %711 = vmatpush.xpose.msra.mxu0 0.0
        %712 = vmatpush.xpose.msra.mxu0 0.0
        %713 = vmatpush.xpose.msra.mxu0 0.0
        %714 = vmatpush.xpose.msra.mxu0 0.0
        %715 = vmatpush.xpose.msra.mxu0 0.0
        %716 = vmatpush.xpose.msra.mxu0 0.0
        %717 = vmatpush.xpose.msra.mxu0 0.0
        %718 = vmatpush.xpose.msra.mxu0 %v702
        %719 = vmatpush.xpose.msra.mxu0 %v700
        %720 = vmatmul.f32.gmra.mxu0 %v696
        %v721 = vpop.f32.mrf.mxu0
        %v722 = vadd.f32 0.0, %v721
        %723 = vmatmul.f32.gmra.mxu0 %v698
        %v724 = vpop.f32.mrf.mxu0
        %v725 = vadd.f32 0.0, %v724
        %726 = vdwg.mxu0
        %v727 = vmul.f32 %v722, 0.25
        %v728 = vmul.f32 %v725, 0.25
        %v729 = vsel %vm571, %v727, -inf
        %730 = vmax.xlane.f32.xlu0 %v729
        %v731 = vpop.xlane.xlu0 %730
        %v732 = vsel %vm571, %v728, -inf
        %733 = vmax.xlane.f32.xlu0 %v732
        %v734 = vpop.xlane.xlu0 %733
        %v735 = vsub.f32 %v727, %v731
        %v736 = vsub.f32 %v728, %v734
        %v737 = vmul.f32 %v735, 1.442695
        %v738 = vpow.pop %v737
        %v739 = vmul.f32 %v736, 1.442695
        %v740 = vpow.pop %v739
        %v741 = vsel %vm571, %v738, 0.0
        %742 = vadd.xlane.f32.xlu0 %v741
        %v743 = vpop.xlane.xlu0 %742
        %v744 = vsel %vm571, %v740, 0.0
        %745 = vadd.xlane.f32.xlu0 %v744
        %v746 = vpop.xlane.xlu0 %745
        %v747 = vrcp.pop %v743
        %v748 = vmul.f32 %v743, %v747
        %v749 = vsub.f32 1.0, %v748
        %v750 = vmul.f32 %v747, %v749
        %v751 = vadd.f32 %v747, %v750
        %vm752 = vweird.f32 %v743
        %vm753 = vweird.f32 %v747
        %vm754 = vmor %vm752, %vm753
        %v755 = vsel %vm754, %v747, %v751
        %v756 = vand.u32 2147483647, %v743
        %vm757 = vcmp.eq.f32.partialorder %v756, 8.507059e+37
        %v758 = vand.u32 %v743, 2147483648
        %v759 = vor.u32 1.1754944e-38, %v758
        %v760 = vsel %vm757, %v759, %v755
        %v761 = vmul.f32 %v738, %v760
        %v762 = vrcp.pop %v746
        %v763 = vmul.f32 %v746, %v762
        %v764 = vsub.f32 1.0, %v763
        %v765 = vmul.f32 %v762, %v764
        %v766 = vadd.f32 %v762, %v765
        %vm767 = vweird.f32 %v746
        %vm768 = vweird.f32 %v762
        %vm769 = vmor %vm767, %vm768
        %v770 = vsel %vm769, %v762, %v766
        %v771 = vand.u32 2147483647, %v746
        %vm772 = vcmp.eq.f32.partialorder %v771, 8.507059e+37
        %v773 = vand.u32 %v746, 2147483648
        %v774 = vor.u32 1.1754944e-38, %v773
        %v775 = vsel %vm772, %v774, %v770
        %v776 = vmul.f32 %v740, %v775
        %v777 = vadd.f32 %v657, %v761
        %v778 = vadd.f32 %v658, %v776
        %781 = vrot.lane.b32.xlu0 %v566, 112
        %v782 = vpop.permute.xlu0 %781
        %783 = vrot.lane.b32.xlu0 %v569, 112
        %v784 = vpop.permute.xlu0 %783
        %v788 = vsel %vm571, %v761, 0
        %v791 = vsel %vm571, %v776, 0
        %793 = vmatpush.msra.mxu0 0.0
        %794 = vmatpush.msra.mxu0 0.0
        %795 = vmatpush.msra.mxu0 0.0
        %796 = vmatpush.msra.mxu0 0.0
        %797 = vmatpush.msra.mxu0 0.0
        %798 = vmatpush.msra.mxu0 0.0
        %799 = vmatpush.msra.mxu0 0.0
        %800 = vmatpush.msra.mxu0 0.0
        %801 = vmatpush.msra.mxu0 0.0
        %802 = vmatpush.msra.mxu0 0.0
        %803 = vmatpush.msra.mxu0 0.0
        %804 = vmatpush.msra.mxu0 0.0
        %805 = vmatpush.msra.mxu0 0.0
        %806 = vmatpush.msra.mxu0 0.0
        %807 = vmatpush.msra.mxu0 %v784
        %808 = vmatpush.msra.mxu0 %v782
        %809 = vmatmul.f32.gmra.mxu0 %v788
        %v810 = vpop.f32.mrf.mxu0
        %v811 = vadd.f32 0.0, %v810
        %812 = vmatmul.f32.gmra.mxu0 %v791
        %v813 = vpop.f32.mrf.mxu0
        %v814 = vadd.f32 0.0, %v813
        %815 = vdwg.mxu0
        %816 = vrot.lane.b32.xlu0 %v496, 96
        %v817 = vpop.permute.xlu0 %816
        %818 = vrot.lane.b32.xlu0 %v499, 96
        %v819 = vpop.permute.xlu0 %818
        %820 = vrot.lane.b32.xlu0 %v531, 96
        %v821 = vpop.permute.xlu0 %820
        %822 = vrot.lane.b32.xlu0 %v534, 96
        %v823 = vpop.permute.xlu0 %822
        %v824 = vsel %vm571, %v817, 0
        %v826 = vsel %vm571, %v819, 0
        %v828 = vsel %vm571, %v821, 0
        %v830 = vsel %vm571, %v823, 0
        %832 = vmatpush.xpose.msra.mxu0 0.0
        %833 = vmatpush.xpose.msra.mxu0 0.0
        %834 = vmatpush.xpose.msra.mxu0 0.0
        %835 = vmatpush.xpose.msra.mxu0 0.0
        %836 = vmatpush.xpose.msra.mxu0 0.0
        %837 = vmatpush.xpose.msra.mxu0 0.0
        %838 = vmatpush.xpose.msra.mxu0 0.0
        %839 = vmatpush.xpose.msra.mxu0 0.0
        %840 = vmatpush.xpose.msra.mxu0 0.0
        %841 = vmatpush.xpose.msra.mxu0 0.0
        %842 = vmatpush.xpose.msra.mxu0 0.0
        %843 = vmatpush.xpose.msra.mxu0 0.0
        %844 = vmatpush.xpose.msra.mxu0 0.0
        %845 = vmatpush.xpose.msra.mxu0 0.0
        %846 = vmatpush.xpose.msra.mxu0 %v830
        %847 = vmatpush.xpose.msra.mxu0 %v828
        %848 = vmatmul.f32.gmra.mxu0 %v824
        %v849 = vpop.f32.mrf.mxu0
        %v850 = vadd.f32 0.0, %v849
        %851 = vmatmul.f32.gmra.mxu0 %v826
        %v852 = vpop.f32.mrf.mxu0
        %v853 = vadd.f32 0.0, %v852
        %854 = vdwg.mxu0
        %v855 = vmul.f32 %v850, 0.25
        %v856 = vmul.f32 %v853, 0.25
        %v857 = vsel %vm571, %v855, -inf
        %858 = vmax.xlane.f32.xlu0 %v857
        %v859 = vpop.xlane.xlu0 %858
        %v860 = vsel %vm571, %v856, -inf
        %861 = vmax.xlane.f32.xlu0 %v860
        %v862 = vpop.xlane.xlu0 %861
        %v863 = vsub.f32 %v855, %v859
        %v864 = vsub.f32 %v856, %v862
        %v865 = vmul.f32 %v863, 1.442695
        %v866 = vpow.pop %v865
        %v867 = vmul.f32 %v864, 1.442695
        %v868 = vpow.pop %v867
        %v869 = vsel %vm571, %v866, 0.0
        %870 = vadd.xlane.f32.xlu0 %v869
        %v871 = vpop.xlane.xlu0 %870
        %v872 = vsel %vm571, %v868, 0.0
        %873 = vadd.xlane.f32.xlu0 %v872
        %v874 = vpop.xlane.xlu0 %873
        %v875 = vrcp.pop %v871
        %v876 = vmul.f32 %v871, %v875
        %v877 = vsub.f32 1.0, %v876
        %v878 = vmul.f32 %v875, %v877
        %v879 = vadd.f32 %v875, %v878
        %vm880 = vweird.f32 %v871
        %vm881 = vweird.f32 %v875
        %vm882 = vmor %vm880, %vm881
        %v883 = vsel %vm882, %v875, %v879
        %v884 = vand.u32 2147483647, %v871
        %vm885 = vcmp.eq.f32.partialorder %v884, 8.507059e+37
        %v886 = vand.u32 %v871, 2147483648
        %v887 = vor.u32 1.1754944e-38, %v886
        %v888 = vsel %vm885, %v887, %v883
        %v889 = vmul.f32 %v866, %v888
        %v890 = vrcp.pop %v874
        %v891 = vmul.f32 %v874, %v890
        %v892 = vsub.f32 1.0, %v891
        %v893 = vmul.f32 %v890, %v892
        %v894 = vadd.f32 %v890, %v893
        %vm895 = vweird.f32 %v874
        %vm896 = vweird.f32 %v890
        %vm897 = vmor %vm895, %vm896
        %v898 = vsel %vm897, %v890, %v894
        %v899 = vand.u32 2147483647, %v874
        %vm900 = vcmp.eq.f32.partialorder %v899, 8.507059e+37
        %v901 = vand.u32 %v874, 2147483648
        %v902 = vor.u32 1.1754944e-38, %v901
        %v903 = vsel %vm900, %v902, %v898
        %v904 = vmul.f32 %v868, %v903
        %v905 = vadd.f32 %v777, %v889
        %v906 = vadd.f32 %v778, %v904
        %907 = vrot.lane.b32.xlu0 %v566, 96
        %v908 = vpop.permute.xlu0 %907
        %909 = vrot.lane.b32.xlu0 %v569, 96
        %v910 = vpop.permute.xlu0 %909
        %v914 = vsel %vm571, %v889, 0
        %v917 = vsel %vm571, %v904, 0
        %919 = vmatpush.msra.mxu0 0.0
        %920 = vmatpush.msra.mxu0 0.0
        %921 = vmatpush.msra.mxu0 0.0
        %922 = vmatpush.msra.mxu0 0.0
        %923 = vmatpush.msra.mxu0 0.0
        %924 = vmatpush.msra.mxu0 0.0
        %925 = vmatpush.msra.mxu0 0.0
        %926 = vmatpush.msra.mxu0 0.0
        %927 = vmatpush.msra.mxu0 0.0
        %928 = vmatpush.msra.mxu0 0.0
        %929 = vmatpush.msra.mxu0 0.0
        %930 = vmatpush.msra.mxu0 0.0
        %931 = vmatpush.msra.mxu0 0.0
        %932 = vmatpush.msra.mxu0 0.0
        %933 = vmatpush.msra.mxu0 %v910
        %934 = vmatpush.msra.mxu0 %v908
        %935 = vmatmul.f32.gmra.mxu0 %v914
        %v936 = vpop.f32.mrf.mxu0
        %v937 = vadd.f32 0.0, %v936
        %938 = vmatmul.f32.gmra.mxu0 %v917
        %v939 = vpop.f32.mrf.mxu0
        %v940 = vadd.f32 0.0, %v939
        %941 = vdwg.mxu0
        %942 = vrot.lane.b32.xlu0 %v496, 80
        %v943 = vpop.permute.xlu0 %942
        %944 = vrot.lane.b32.xlu0 %v499, 80
        %v945 = vpop.permute.xlu0 %944
        %946 = vrot.lane.b32.xlu0 %v531, 80
        %v947 = vpop.permute.xlu0 %946
        %948 = vrot.lane.b32.xlu0 %v534, 80
        %v949 = vpop.permute.xlu0 %948
        %v950 = vsel %vm571, %v943, 0
        %v952 = vsel %vm571, %v945, 0
        %v954 = vsel %vm571, %v947, 0
        %v956 = vsel %vm571, %v949, 0
        %958 = vmatpush.xpose.msra.mxu0 0.0
        %959 = vmatpush.xpose.msra.mxu0 0.0
        %960 = vmatpush.xpose.msra.mxu0 0.0
        %961 = vmatpush.xpose.msra.mxu0 0.0
        %962 = vmatpush.xpose.msra.mxu0 0.0
        %963 = vmatpush.xpose.msra.mxu0 0.0
        %964 = vmatpush.xpose.msra.mxu0 0.0
        %965 = vmatpush.xpose.msra.mxu0 0.0
        %966 = vmatpush.xpose.msra.mxu0 0.0
        %967 = vmatpush.xpose.msra.mxu0 0.0
        %968 = vmatpush.xpose.msra.mxu0 0.0
        %969 = vmatpush.xpose.msra.mxu0 0.0
        %970 = vmatpush.xpose.msra.mxu0 0.0
        %971 = vmatpush.xpose.msra.mxu0 0.0
        %972 = vmatpush.xpose.msra.mxu0 %v956
        %973 = vmatpush.xpose.msra.mxu0 %v954
        %974 = vmatmul.f32.gmra.mxu0 %v950
        %v975 = vpop.f32.mrf.mxu0
        %v976 = vadd.f32 0.0, %v975
        %977 = vmatmul.f32.gmra.mxu0 %v952
        %v978 = vpop.f32.mrf.mxu0
        %v979 = vadd.f32 0.0, %v978
        %980 = vdwg.mxu0
        %v981 = vmul.f32 %v976, 0.25
        %v982 = vmul.f32 %v979, 0.25
        %v983 = vsel %vm571, %v981, -inf
        %984 = vmax.xlane.f32.xlu0 %v983
        %v985 = vpop.xlane.xlu0 %984
        %v986 = vsel %vm571, %v982, -inf
        %987 = vmax.xlane.f32.xlu0 %v986
        %v988 = vpop.xlane.xlu0 %987
        %v989 = vsub.f32 %v981, %v985
        %v990 = vsub.f32 %v982, %v988
        %v991 = vmul.f32 %v989, 1.442695
        %v992 = vpow.pop %v991
        %v993 = vmul.f32 %v990, 1.442695
        %v994 = vpow.pop %v993
        %v995 = vsel %vm571, %v992, 0.0
        %996 = vadd.xlane.f32.xlu0 %v995
        %v997 = vpop.xlane.xlu0 %996
        %v998 = vsel %vm571, %v994, 0.0
        %999 = vadd.xlane.f32.xlu0 %v998
        %v1000 = vpop.xlane.xlu0 %999
        %v1001 = vrcp.pop %v997
        %v1002 = vmul.f32 %v997, %v1001
        %v1003 = vsub.f32 1.0, %v1002
        %v1004 = vmul.f32 %v1001, %v1003
        %v1005 = vadd.f32 %v1001, %v1004
        %vm1006 = vweird.f32 %v997
        %vm1007 = vweird.f32 %v1001
        %vm1008 = vmor %vm1006, %vm1007
        %v1009 = vsel %vm1008, %v1001, %v1005
        %v1010 = vand.u32 2147483647, %v997
        %vm1011 = vcmp.eq.f32.partialorder %v1010, 8.507059e+37
        %v1012 = vand.u32 %v997, 2147483648
        %v1013 = vor.u32 1.1754944e-38, %v1012
        %v1014 = vsel %vm1011, %v1013, %v1009
        %v1015 = vmul.f32 %v992, %v1014
        %v1016 = vrcp.pop %v1000
        %v1017 = vmul.f32 %v1000, %v1016
        %v1018 = vsub.f32 1.0, %v1017
        %v1019 = vmul.f32 %v1016, %v1018
        %v1020 = vadd.f32 %v1016, %v1019
        %vm1021 = vweird.f32 %v1000
        %vm1022 = vweird.f32 %v1016
        %vm1023 = vmor %vm1021, %vm1022
        %v1024 = vsel %vm1023, %v1016, %v1020
        %v1025 = vand.u32 2147483647, %v1000
        %vm1026 = vcmp.eq.f32.partialorder %v1025, 8.507059e+37
        %v1027 = vand.u32 %v1000, 2147483648
        %v1028 = vor.u32 1.1754944e-38, %v1027
        %v1029 = vsel %vm1026, %v1028, %v1024
        %v1030 = vmul.f32 %v994, %v1029
        %v1031 = vadd.f32 %v905, %v1015
        %v1032 = vadd.f32 %v906, %v1030
        %1033 = vrot.lane.b32.xlu0 %v566, 80
        %v1034 = vpop.permute.xlu0 %1033
        %1035 = vrot.lane.b32.xlu0 %v569, 80
        %v1036 = vpop.permute.xlu0 %1035
        %v1040 = vsel %vm571, %v1015, 0
        %v1043 = vsel %vm571, %v1030, 0
        %1045 = vmatpush.msra.mxu0 0.0
        %1046 = vmatpush.msra.mxu0 0.0
        %1047 = vmatpush.msra.mxu0 0.0
        %1048 = vmatpush.msra.mxu0 0.0
        %1049 = vmatpush.msra.mxu0 0.0
        %1050 = vmatpush.msra.mxu0 0.0
        %1051 = vmatpush.msra.mxu0 0.0
        %1052 = vmatpush.msra.mxu0 0.0
        %1053 = vmatpush.msra.mxu0 0.0
        %1054 = vmatpush.msra.mxu0 0.0
        %1055 = vmatpush.msra.mxu0 0.0
        %1056 = vmatpush.msra.mxu0 0.0
        %1057 = vmatpush.msra.mxu0 0.0
        %1058 = vmatpush.msra.mxu0 0.0
        %1059 = vmatpush.msra.mxu0 %v1036
        %1060 = vmatpush.msra.mxu0 %v1034
        %1061 = vmatmul.f32.gmra.mxu0 %v1040
        %v1062 = vpop.f32.mrf.mxu0
        %v1063 = vadd.f32 0.0, %v1062
        %1064 = vmatmul.f32.gmra.mxu0 %v1043
        %v1065 = vpop.f32.mrf.mxu0
        %v1066 = vadd.f32 0.0, %v1065
        %1067 = vdwg.mxu0
        %1070 = vrot.lane.b32.xlu0 %v811, 16
        %v1071 = vpop.permute.xlu0 %1070
        %1072 = vrot.lane.b32.xlu0 %v814, 16
        %v1073 = vpop.permute.xlu0 %1072
        %1078 = vrot.lane.b32.xlu0 %v937, 32
        %v1079 = vpop.permute.xlu0 %1078
        %1080 = vrot.lane.b32.xlu0 %v940, 32
        %v1081 = vpop.permute.xlu0 %1080
        %1086 = vrot.lane.b32.xlu0 %v1063, 48
        %v1087 = vpop.permute.xlu0 %1086
        %1088 = vrot.lane.b32.xlu0 %v1066, 48
        %v1089 = vpop.permute.xlu0 %1088
        %v1092 = vsel %vm571, %v683, %v1071
        %v1093 = vsel %vm571, %v686, %v1073
        %vm1094 = vcmask 261120
        %v1095 = vsel %vm1094, %v1092, %v1079
        %v1096 = vsel %vm1094, %v1093, %v1081
        %vm1097 = vcmask 392192
        %v1098 = vsel %vm1097, %v1095, %v1087
        %v1099 = vsel %vm1097, %v1096, %v1089
        %v1100 = vld [vmem:[#allocation10] sm:$0xff]
        %v1101 = vld [vmem:[#allocation10 + $0x8] sm:$0xff]
        %v1102 = vld [vmem:[#allocation10 + $0x10] sm:$0xff]
        %v1103 = vld [vmem:[#allocation10 + $0x18] sm:$0xff]
        %v1104 = vld [vmem:[#allocation10 + $0x20] sm:$0xff]
        %v1105 = vld [vmem:[#allocation10 + $0x28] sm:$0xff]
        %v1106 = vld [vmem:[#allocation10 + $0x30] sm:$0xff]
        %v1107 = vld [vmem:[#allocation10 + $0x38] sm:$0xff]
        %v1108 = vld [vmem:[%s8] sm:$0x1]
        %v1110 = vperm.slane %v1108, 0
        %v1113 = vsel %vm471, %v1098, 0
        %v1116 = vsel %vm471, %v1099, 0
        %1118 = vmatpush.msra.mxu0 0.0
        %1119 = vmatpush.msra.mxu0 0.0
        %1120 = vmatpush.msra.mxu0 0.0
        %1121 = vmatpush.msra.mxu0 0.0
        %1122 = vmatpush.msra.mxu0 0.0
        %1123 = vmatpush.msra.mxu0 0.0
        %1124 = vmatpush.msra.mxu0 0.0
        %1125 = vmatpush.msra.mxu0 0.0
        %1126 = vmatpush.msra.mxu0 %v1107
        %1127 = vmatpush.msra.mxu0 %v1106
        %1128 = vmatpush.msra.mxu0 %v1105
        %1129 = vmatpush.msra.mxu0 %v1104
        %1130 = vmatpush.msra.mxu0 %v1103
        %1131 = vmatpush.msra.mxu0 %v1102
        %1132 = vmatpush.msra.mxu0 %v1101
        %1133 = vmatpush.msra.mxu0 %v1100
        %1134 = vmatmul.f32.gmra.mxu0 %v1113
        %v1135 = vpop.f32.mrf.mxu0
        %v1136 = vadd.f32 %v1110, %v1135
        %1137 = vmatmul.f32.gmra.mxu0 %v1116
        %v1138 = vpop.f32.mrf.mxu0
        %v1139 = vadd.f32 %v1110, %v1138
        %1140 = vdwg.mxu0
        %1141 = vst.msk [vmem:[%s449] sm:$0xff] %vm471, %v1136
        %1142 = vst.msk [vmem:[%s449 + $0x8] sm:$0xff] %vm471, %v1139
        %v1143 = vmul.f32 %v1031, 0.25
        %v1144 = vmul.f32 %v1032, 0.25
        %1145 = vst.msk [vmem:[%s456] sm:$0xff] %vm571, %v1143
        %1146 = vst.msk [vmem:[%s456 + $0x8] sm:$0xff] %vm571, %v1144
        %s1147 = sand.u32 %s235, 1
        %s1148 = scalar_lea.sflag [#allocation4], %s1147
        %s1149 = sand.u32 %s235, 1
        %s1150 = smul.addr %s1149, 16
        %s1151 = scalar_lea.vmem [#allocation11], %s1150
        %s1152 = sand.u32 %s261, 1
        %s1153 = scalar_lea.sflag [#allocation13], %s1152
        %s1154 = sand.u32 %s261, 1
        %s1155 = smul.addr %s1154, 16
        %s1156 = scalar_lea.vmem [#allocation12], %s1155
        // Predicated region
        $region77: #{tpu_custom_call.1} parent=55 // pred_check
          %p1157 = pneg %p245
        $region78: #{tpu_custom_call.1} parent=55 // pred_check_branch
          %1159 = sbr.rel (%p1157) target = $region80
        $region79: #{tpu_custom_call.1} parent=55 // pred_region
          %1161 = vsyncadd %s1148, 0
          %s1162 = smul.addr %s33, 2
          %s1163 = smul.addr %s1162, 8
          %s1164 = scalar_lea.hbm %s9, %s1163
          %s1165 = sshll.u32 %s1151, 4
          %s1166 = int_to_ptr.vmem [resolvable:$true] %s1165
          %s1167 = sshll.u32 %s1164, 4
          %s1168 = int_to_ptr.hbm [resolvable:$true] %s1167
          %1173 = dma.vmem_to_hbm [thread:$0]  %s1166, 256, %s1168, %s1148, 128, 128, 8
        $region80: #{tpu_custom_call.1} parent=55 // pred_fallthru
          _
        // Predicated region
        $region81: #{tpu_custom_call.1} parent=55 // pred_check
          %p1174 = pneg %p271
        $region82: #{tpu_custom_call.1} parent=55 // pred_check_branch
          %1176 = sbr.rel (%p1174) target = $region84
        $region83: #{tpu_custom_call.1} parent=55 // pred_region
          %1178 = vsyncadd %s1153, 0
          %s1179 = smul.addr %s33, 2
          %s1180 = smul.addr %s1179, 8
          %s1181 = scalar_lea.hbm %s10, %s1180
          %s1182 = sshll.u32 %s1156, 4
          %s1183 = int_to_ptr.vmem [resolvable:$true] %s1182
          %s1184 = sshll.u32 %s1181, 4
          %s1185 = int_to_ptr.hbm [resolvable:$true] %s1184
          %1190 = dma.vmem_to_hbm [thread:$0]  %s1183, 256, %s1185, %s1153, 128, 128, 8
        $region84: #{tpu_custom_call.1} parent=55 // pred_fallthru
          _
      $region56: #{tpu_custom_call.1} parent=5 // pred_fallthru
        _
      %p1191 = scmp.le.s32.totalorder 2, %s28
      // Predicated region
      $region85: #{tpu_custom_call.1} parent=5 // pred_check
        %p1192 = pneg %p1191
      $region86: #{tpu_custom_call.1} parent=5 // pred_check_branch
        %1194 = sbr.rel (%p1192) target = $region88
      $region87: #{tpu_custom_call.1} parent=5 // pred_region
        %s1195 = ssub.s32 %s28, 2
        // Predicated region
        $region89: #{tpu_custom_call.1} parent=87 // pred_check
          %p1196 = pneg %p251
        $region90: #{tpu_custom_call.1} parent=87 // pred_check_branch
          %1198 = sbr.rel (%p1196) target = $region92
        $region91: #{tpu_custom_call.1} parent=87 // pred_region
          %s1199 = sand.u32 %s236, 1
          %s1200 = scalar_lea.sflag [#allocation4], %s1199
          %s1201 = sand.u32 %s236, 1
          %s1202 = smul.addr %s1201, 16
          %s1203 = scalar_lea.vmem [#allocation11], %s1202
          %1205 = dma.done %s1200, 256
        $region92: #{tpu_custom_call.1} parent=87 // pred_fallthru
          _
        // Predicated region
        $region93: #{tpu_custom_call.1} parent=87 // pred_check
          %p1206 = pneg %p277
        $region94: #{tpu_custom_call.1} parent=87 // pred_check_branch
          %1208 = sbr.rel (%p1206) target = $region96
        $region95: #{tpu_custom_call.1} parent=87 // pred_region
          %s1209 = sand.u32 %s262, 1
          %s1210 = scalar_lea.sflag [#allocation13], %s1209
          %s1211 = sand.u32 %s262, 1
          %s1212 = smul.addr %s1211, 16
          %s1213 = scalar_lea.vmem [#allocation12], %s1212
          %1215 = dma.done %s1210, 256
        $region96: #{tpu_custom_call.1} parent=87 // pred_fallthru
          _
      $region88: #{tpu_custom_call.1} parent=5 // pred_fallthru
        _
    $region6: #{tpu_custom_call.1} parent=1 // loop_footer
      %s32 = sadd.s32 1, %s28
    $region7: #{tpu_custom_call.1} parent=1 // loop_footer_branch
      %27 = sbr.rel target = $region3
    $region8: #{tpu_custom_call.1} parent=1 // loop_exit
      _
    %1216 = vsyncpa [#allocation3], 1
    %s1217 = scalar_lea.sflag [#allocation3], 1
    %1218 = vsyncpa %s1217, 1
    %1219 = vsyncpa [#allocation6], 1
    %1220 = vsyncpa [#allocation9], 1
    %1221 = vsyncpa [#allocation4], 1
    %s1222 = scalar_lea.sflag [#allocation4], 1
    %1223 = vsyncpa %s1222, 1
    %1224 = vsyncpa [#allocation13], 1
    %s1225 = scalar_lea.sflag [#allocation13], 1
    %1226 = vsyncpa %s1225, 1

</llo_original>
